<compile_context>
chip_gen: v7x
topology: tpu7x:2x2x1
jax: 0.10.0
libtpu: 0.0.40
codegen_flags: <defaults>
</compile_context>

<pallas_src>
import jax
import jax.numpy as jnp
import numpy as np
from jax.experimental import pallas as pl
from jax.experimental.pallas import tpu as pltpu

BN_EPS = 1e-5
LANE = 128


def _round_up(x, m):
    return ((x + m - 1) // m) * m


def _bn_relu(z, gamma, beta, inv_n):
    """Training-mode BatchNorm1d (biased variance over the node axis) + ReLU.

    Two-pass centered statistics (no concat temporary, no E[z^2]-E[z]^2
    cancellation); gamma folded into the rsqrt scale.  All math in f32."""
    mean = jnp.sum(z, axis=0, keepdims=True) * inv_n          # [1, P]
    zc = z - mean
    var = jnp.sum(zc * zc, axis=0, keepdims=True) * inv_n     # [1, P]
    scale = gamma * jax.lax.rsqrt(var + BN_EPS)               # gamma folded in
    return jnp.maximum(zc * scale + beta, 0.0)


def _gin_layer_kernel(a_ref, h0_ref, w1_ref, w2_ref,
                      g1_ref, b1_ref, g2_ref, b2_ref, o_ref, h_scr):
    """One grid step = one GIN layer: (A+I)@h -> W1 -> BN+ReLU -> W2 -> BN+ReLU.

    h is carried across layers in a persistent VMEM scratch; per-layer weights
    are streamed (double-buffered) by the BlockSpec pipeline."""
    layer = pl.program_id(0)

    @pl.when(layer == 0)
    def _():
        h_scr[...] = h0_ref[...]                  # seed the carried activations

    a = a_ref[...]                                # [N, N] bf16, already A + I
    h_bf = h_scr[...]                             # [N, P] bf16 (lane-padded)
    inv_n = 1.0 / a.shape[0]                      # true node count (no node pad)

    # GINConv (eps = 0, 'sum'): self term folded into A.
    x = jnp.dot(a, h_bf, preferred_element_type=jnp.float32)              # [N, P]
    # MLP linear 0 (bias=False) + internal BN + ReLU.
    z1 = jnp.dot(x.astype(jnp.bfloat16), w1_ref[0],
                 preferred_element_type=jnp.float32)
    h1 = _bn_relu(z1, g1_ref[0], b1_ref[0], inv_n)
    # MLP linear 1 (bias=False) + outer BN + ReLU.
    z2 = jnp.dot(h1.astype(jnp.bfloat16), w2_ref[0],
                 preferred_element_type=jnp.float32)
    h2 = _bn_relu(z2, g2_ref[0], b2_ref[0], inv_n)

    h_scr[...] = h2.astype(jnp.bfloat16)          # next layer's MXU input

    @pl.when(layer == pl.num_programs(0) - 1)
    def _():
        o_ref[...] = h2                           # lane-dense f32 store [N, P]


def init_params(key, input_dim, hidden_dim, n_layers):
    """PyTorch nn.Linear weight is [out, in]; store the transpose [in, out]."""
    params = []
    for layer in range(n_layers - 1):
        din = input_dim if layer == 0 else hidden_dim
        key, k1, k2 = jax.random.split(key, 3)
        bound1 = 1.0 / np.sqrt(din)
        bound2 = 1.0 / np.sqrt(hidden_dim)
        w1 = jax.random.uniform(k1, (hidden_dim, din), jnp.float32, -bound1, bound1)
        w2 = jax.random.uniform(k2, (hidden_dim, hidden_dim), jnp.float32, -bound2, bound2)
        params.append({
            "w1_t": w1.T,                                     # [Din, H]
            "w2_t": w2.T,                                     # [H, H]
            "g1": jnp.ones((1, hidden_dim), jnp.float32),     # MLP BN gamma
            "b1": jnp.zeros((1, hidden_dim), jnp.float32),    # MLP BN beta
            "g2": jnp.ones((1, hidden_dim), jnp.float32),     # outer BN gamma
            "b2": jnp.zeros((1, hidden_dim), jnp.float32),    # outer BN beta
        })
    return params


def pack_params(params, pad_to):
    """Stack per-layer params to [L, ...] and zero-pad feature axes to `pad_to`
    (lane-dense).  Zero-padded weight columns AND zero-padded gamma/beta keep
    padded channels exactly 0 through every layer, so feature padding never
    perturbs BN statistics."""
    def pad_mat(w):
        return jnp.pad(w, ((0, pad_to - w.shape[0]), (0, pad_to - w.shape[1])))

    def pad_vec(v):
        return jnp.pad(v, ((0, 0), (0, pad_to - v.shape[1])))

    w1_s = jnp.stack([pad_mat(p["w1_t"]) for p in params]).astype(jnp.bfloat16)
    w2_s = jnp.stack([pad_mat(p["w2_t"]) for p in params]).astype(jnp.bfloat16)
    g1_s = jnp.stack([pad_vec(p["g1"]) for p in params])      # [L, 1, P] f32
    b1_s = jnp.stack([pad_vec(p["b1"]) for p in params])
    g2_s = jnp.stack([pad_vec(p["g2"]) for p in params])
    b2_s = jnp.stack([pad_vec(p["b2"]) for p in params])
    return w1_s, w2_s, g1_s, b1_s, g2_s, b2_s


def gin_forward(adj, h0, params, hidden_dim):
    """Layer-streamed pallas_call for the whole GIN stack.

    `adj` may be a single graph or a block-diagonal batch of graphs; `h0` are
    the (concatenated) node features."""
    n, din = h0.shape
    p = _round_up(max(din, hidden_dim), LANE)
    num_layers = len(params)
    if num_layers == 0:
        return h0                                 # module with n_layers == 1

    # Fold the eps=0 self term into the adjacency; 0/1 entries are exact in bf16.
    a_hat = (adj + jnp.eye(n, dtype=adj.dtype)).astype(jnp.bfloat16)
    h0_p = jnp.pad(h0, ((0, 0), (0, p - din))).astype(jnp.bfloat16)
    w1_s, w2_s, g1_s, b1_s, g2_s, b2_s = pack_params(params, p)

    flops = 2 * num_layers * (n * n * p + 2 * n * p * p)
    bytes_accessed = (a_hat.size * 2 + h0_p.size * 2
                      + (w1_s.size + w2_s.size) * 2
                      + (g1_s.size + b1_s.size + g2_s.size + b2_s.size) * 4
                      + n * p * 4)

    grid_spec = pltpu.PrefetchScalarGridSpec(
        num_scalar_prefetch=0,
        grid=(num_layers,),
        in_specs=[
            # A and h0: constant block index -> DMA'd once, resident all layers.
            pl.BlockSpec((n, n), lambda l: (0, 0)),
            pl.BlockSpec((n, p), lambda l: (0, 0)),
            # Per-layer weights / BN params: streamed + double-buffered.
            pl.BlockSpec((1, p, p), lambda l: (l, 0, 0)),
            pl.BlockSpec((1, p, p), lambda l: (l, 0, 0)),
            pl.BlockSpec((1, 1, p), lambda l: (l, 0, 0)),
            pl.BlockSpec((1, 1, p), lambda l: (l, 0, 0)),
            pl.BlockSpec((1, 1, p), lambda l: (l, 0, 0)),
            pl.BlockSpec((1, 1, p), lambda l: (l, 0, 0)),
        ],
        out_specs=pl.BlockSpec((n, p), lambda l: (0, 0)),
        scratch_shapes=[pltpu.VMEM((n, p), jnp.bfloat16)],    # carried h
    )

    out = pl.pallas_call(
        _gin_layer_kernel,
        out_shape=jax.ShapeDtypeStruct((n, p), jnp.float32),
        grid_spec=grid_spec,
        compiler_params=pltpu.CompilerParams(
            dimension_semantics=("arbitrary",)),              # layers are serial
        cost_estimate=pl.CostEstimate(
            flops=flops, transcendentals=2 * num_layers * p,
            bytes_accessed=bytes_accessed),
    )(a_hat, h0_p, w1_s, w2_s, g1_s, b1_s, g2_s, b2_s)

    return out[:, :hidden_dim]


def gin_forward_ref(adj, h0, params):
    """Plain-JAX reference with identical semantics and matched MXU precision
    (bf16 matmul operands, f32 accumulation, f32 two-pass BatchNorm)."""
    n = adj.shape[0]
    a = (adj + jnp.eye(n, dtype=adj.dtype)).astype(jnp.bfloat16)
    h = h0
    for prm in params:
        x = jnp.dot(a, h.astype(jnp.bfloat16), preferred_element_type=jnp.float32)
        z1 = jnp.dot(x.astype(jnp.bfloat16), prm["w1_t"].astype(jnp.bfloat16),
                     preferred_element_type=jnp.float32)
        m1 = jnp.mean(z1, axis=0, keepdims=True)
        v1 = jnp.mean((z1 - m1) ** 2, axis=0, keepdims=True)
        h1 = jnp.maximum((z1 - m1) * jax.lax.rsqrt(v1 + BN_EPS) * prm["g1"] + prm["b1"], 0.0)
        z2 = jnp.dot(h1.astype(jnp.bfloat16), prm["w2_t"].astype(jnp.bfloat16),
                     preferred_element_type=jnp.float32)
        m2 = jnp.mean(z2, axis=0, keepdims=True)
        v2 = jnp.mean((z2 - m2) ** 2, axis=0, keepdims=True)
        h = jnp.maximum((z2 - m2) * jax.lax.rsqrt(v2 + BN_EPS) * prm["g2"] + prm["b2"], 0.0)
    return h


if __name__ == "__main__":
    nodes_per_graph = 32
    n_graphs = 8            # batched block-diagonally -> M = 256 (fills MXU rows)
    input_dim = 16
    hidden_dim = 32
    n_layers = 3            # -> 2 GIN layers

    key = jax.random.PRNGKey(0)
    k_adj, k_h, k_p = jax.random.split(key, 3)

    # Random per-graph dense adjacencies (no self loops; self term added in the
    # wrapper), assembled into one DGL-style block-diagonal batched graph.
    adjs = (jax.random.uniform(k_adj, (n_graphs, nodes_per_graph, nodes_per_graph))
            < 0.2).astype(jnp.float32)
    adjs = adjs * (1.0 - jnp.eye(nodes_per_graph, dtype=jnp.float32))
    n_total = n_graphs * nodes_per_graph
    adj = jnp.zeros((n_total, n_total), jnp.float32)
    for i in range(n_graphs):
        s = i * nodes_per_graph
        adj = adj.at[s:s + nodes_per_graph, s:s + nodes_per_graph].set(adjs[i])

    h0 = jax.random.normal(k_h, (n_total, input_dim), jnp.float32)
    params = init_params(k_p, input_dim, hidden_dim, n_layers)

    out = jax.block_until_ready(gin_forward(adj, h0, params, hidden_dim))
    ref = jax.block_until_ready(gin_forward_ref(adj, h0, params))

    assert out.shape == (n_total, hidden_dim)
    np.testing.assert_allclose(np.asarray(out), np.asarray(ref), rtol=1e-2, atol=1e-2)
    print("KERNEL_OK")
</pallas_src>

<mosaic_0001>
module attributes {stable_mosaic.version = 11 : i64} {
  func.func @_gin_layer_kernel(%arg0: i32, %arg1: memref<256x256xbf16, #tpu.memory_space<vmem>>, %arg2: memref<256x128xbf16, #tpu.memory_space<vmem>>, %arg3: memref<1x128x128xbf16, #tpu.memory_space<vmem>>, %arg4: memref<1x128x128xbf16, #tpu.memory_space<vmem>>, %arg5: memref<1x1x128xf32, #tpu.memory_space<vmem>>, %arg6: memref<1x1x128xf32, #tpu.memory_space<vmem>>, %arg7: memref<1x1x128xf32, #tpu.memory_space<vmem>>, %arg8: memref<1x1x128xf32, #tpu.memory_space<vmem>>, %arg9: memref<256x128xf32, #tpu.memory_space<vmem>>, %arg10: memref<256x128xbf16, #tpu.memory_space<vmem>>) attributes {dimension_semantics = [#tpu.dimension_semantics<arbitrary>], iteration_bounds = array<i64: 2>, scalar_prefetch = 0 : i64, scratch_operands = 1 : i64, tpu.core_type = #tpu.core_type<tc>, window_params = [{pipeline_mode = #tpu.pipeline_mode<synchronous>, transform_indices = @transform_0, window_bounds = array<i64: 256, 256>}, {pipeline_mode = #tpu.pipeline_mode<synchronous>, transform_indices = @transform_1, window_bounds = array<i64: 256, 128>}, {transform_indices = @transform_2, window_bounds = array<i64: 1, 128, 128>}, {transform_indices = @transform_3, window_bounds = array<i64: 1, 128, 128>}, {transform_indices = @transform_4, window_bounds = array<i64: 1, 1, 128>}, {transform_indices = @transform_5, window_bounds = array<i64: 1, 1, 128>}, {transform_indices = @transform_6, window_bounds = array<i64: 1, 1, 128>}, {transform_indices = @transform_7, window_bounds = array<i64: 1, 1, 128>}, {pipeline_mode = #tpu.pipeline_mode<synchronous>, transform_indices = @transform_8, window_bounds = array<i64: 256, 128>}]} {
    %c0_i32 = arith.constant 0 : i32
    %0 = arith.cmpi eq, %arg0, %c0_i32 : i32
    %1 = arith.extui %0 : i1 to i32
    %c0_i32_0 = arith.constant 0 : i32
    %2 = arith.cmpi ne, %1, %c0_i32_0 : i32
    scf.if %2 {
      %c0_39 = arith.constant 0 : index
      %c0_40 = arith.constant 0 : index
      %69 = vector.load %arg2[%c0_39, %c0_40] : memref<256x128xbf16, #tpu.memory_space<vmem>>, vector<256x128xbf16>
      %c0_41 = arith.constant 0 : index
      %c0_42 = arith.constant 0 : index
      %70 = vector.load %arg10[%c0_41, %c0_42] : memref<256x128xbf16, #tpu.memory_space<vmem>>, vector<256x128xbf16>
      tpu.vector_store %arg10[%c0_41, %c0_42], %69 {strides = array<i32>} : memref<256x128xbf16, #tpu.memory_space<vmem>>, vector<256x128xbf16>,
    } else {
    }
    %c0 = arith.constant 0 : index
    %c0_1 = arith.constant 0 : index
    %3 = vector.load %arg1[%c0, %c0_1] : memref<256x256xbf16, #tpu.memory_space<vmem>>, vector<256x256xbf16>
    %c0_2 = arith.constant 0 : index
    %c0_3 = arith.constant 0 : index
    %4 = vector.load %arg10[%c0_2, %c0_3] : memref<256x128xbf16, #tpu.memory_space<vmem>>, vector<256x128xbf16>
    %cst = arith.constant dense<0.000000e+00> : vector<256x128xf32>
    %5 = tpu.matmul %3, %4, %cst {dimension_numbers = #tpu.dot_dimension_numbers<[1], [0], [0], [1], [0, 0, 1, 1], [], []>} : vector<256x256xbf16>, vector<256x128xbf16>, vector<256x128xf32> -> vector<256x128xf32>
    %6 = arith.truncf %5 : vector<256x128xf32> to vector<256x128xbf16>
    %c0_4 = arith.constant 0 : index
    %c0_5 = arith.constant 0 : index
    %c0_6 = arith.constant 0 : index
    %7 = vector.load %arg3[%c0_4, %c0_5, %c0_6] : memref<1x128x128xbf16, #tpu.memory_space<vmem>>, vector<1x128x128xbf16>
    %8 = vector.shape_cast %7 : vector<1x128x128xbf16> to vector<128x128xbf16>
    %cst_7 = arith.constant dense<0.000000e+00> : vector<256x128xf32>
    %9 = tpu.matmul %6, %8, %cst_7 {dimension_numbers = #tpu.dot_dimension_numbers<[1], [0], [0], [1], [0, 0, 1, 1], [], []>} : vector<256x128xbf16>, vector<128x128xbf16>, vector<256x128xf32> -> vector<256x128xf32>
    %c0_8 = arith.constant 0 : index
    %c0_9 = arith.constant 0 : index
    %c0_10 = arith.constant 0 : index
    %10 = vector.load %arg5[%c0_8, %c0_9, %c0_10] : memref<1x1x128xf32, #tpu.memory_space<vmem>>, vector<1x1x128xf32>
    %11 = vector.shape_cast %10 : vector<1x1x128xf32> to vector<1x128xf32>
    %c0_11 = arith.constant 0 : index
    %c0_12 = arith.constant 0 : index
    %c0_13 = arith.constant 0 : index
    %12 = vector.load %arg6[%c0_11, %c0_12, %c0_13] : memref<1x1x128xf32, #tpu.memory_space<vmem>>, vector<1x1x128xf32>
    %13 = vector.shape_cast %12 : vector<1x1x128xf32> to vector<1x128xf32>
    %cst_14 = arith.constant dense<0.000000e+00> : vector<128xf32>
    %14 = vector.multi_reduction <add>, %9, %cst_14 [0] : vector<256x128xf32> to vector<128xf32>
    %15 = vector.shape_cast %14 : vector<128xf32> to vector<1x128xf32>
    %cst_15 = arith.constant 3.906250e-03 : f32
    %16 = vector.broadcast %cst_15 : f32 to vector<1x128xf32>
    %17 = arith.mulf %15, %16 : vector<1x128xf32>
    %18 = vector.broadcast %17 : vector<1x128xf32> to vector<256x128xf32>
    %19 = arith.subf %9, %18 : vector<256x128xf32>
    %20 = arith.mulf %19, %19 : vector<256x128xf32>
    %cst_16 = arith.constant dense<0.000000e+00> : vector<128xf32>
    %21 = vector.multi_reduction <add>, %20, %cst_16 [0] : vector<256x128xf32> to vector<128xf32>
    %22 = vector.shape_cast %21 : vector<128xf32> to vector<1x128xf32>
    %cst_17 = arith.constant 3.906250e-03 : f32
    %23 = vector.broadcast %cst_17 : f32 to vector<1x128xf32>
    %24 = arith.mulf %22, %23 : vector<1x128xf32>
    %cst_18 = arith.constant 9.99999974E-6 : f32
    %25 = vector.broadcast %cst_18 : f32 to vector<1x128xf32>
    %26 = arith.addf %24, %25 : vector<1x128xf32>
    %27 = math.rsqrt %26 : vector<1x128xf32>
    %28 = arith.mulf %11, %27 : vector<1x128xf32>
    %29 = vector.broadcast %28 : vector<1x128xf32> to vector<256x128xf32>
    %30 = arith.mulf %19, %29 : vector<256x128xf32>
    %31 = vector.broadcast %13 : vector<1x128xf32> to vector<256x128xf32>
    %32 = arith.addf %30, %31 : vector<256x128xf32>
    %cst_19 = arith.constant 0.000000e+00 : f32
    %33 = vector.broadcast %cst_19 : f32 to vector<256x128xf32>
    %34 = arith.maximumf %32, %33 : vector<256x128xf32>
    %35 = arith.truncf %34 : vector<256x128xf32> to vector<256x128xbf16>
    %c0_20 = arith.constant 0 : index
    %c0_21 = arith.constant 0 : index
    %c0_22 = arith.constant 0 : index
    %36 = vector.load %arg4[%c0_20, %c0_21, %c0_22] : memref<1x128x128xbf16, #tpu.memory_space<vmem>>, vector<1x128x128xbf16>
    %37 = vector.shape_cast %36 : vector<1x128x128xbf16> to vector<128x128xbf16>
    %cst_23 = arith.constant dense<0.000000e+00> : vector<256x128xf32>
    %38 = tpu.matmul %35, %37, %cst_23 {dimension_numbers = #tpu.dot_dimension_numbers<[1], [0], [0], [1], [0, 0, 1, 1], [], []>} : vector<256x128xbf16>, vector<128x128xbf16>, vector<256x128xf32> -> vector<256x128xf32>
    %c0_24 = arith.constant 0 : index
    %c0_25 = arith.constant 0 : index
    %c0_26 = arith.constant 0 : index
    %39 = vector.load %arg7[%c0_24, %c0_25, %c0_26] : memref<1x1x128xf32, #tpu.memory_space<vmem>>, vector<1x1x128xf32>
    %40 = vector.shape_cast %39 : vector<1x1x128xf32> to vector<1x128xf32>
    %c0_27 = arith.constant 0 : index
    %c0_28 = arith.constant 0 : index
    %c0_29 = arith.constant 0 : index
    %41 = vector.load %arg8[%c0_27, %c0_28, %c0_29] : memref<1x1x128xf32, #tpu.memory_space<vmem>>, vector<1x1x128xf32>
    %42 = vector.shape_cast %41 : vector<1x1x128xf32> to vector<1x128xf32>
    %cst_30 = arith.constant dense<0.000000e+00> : vector<128xf32>
    %43 = vector.multi_reduction <add>, %38, %cst_30 [0] : vector<256x128xf32> to vector<128xf32>
    %44 = vector.shape_cast %43 : vector<128xf32> to vector<1x128xf32>
    %cst_31 = arith.constant 3.906250e-03 : f32
    %45 = vector.broadcast %cst_31 : f32 to vector<1x128xf32>
    %46 = arith.mulf %44, %45 : vector<1x128xf32>
    %47 = vector.broadcast %46 : vector<1x128xf32> to vector<256x128xf32>
    %48 = arith.subf %38, %47 : vector<256x128xf32>
    %49 = arith.mulf %48, %48 : vector<256x128xf32>
    %cst_32 = arith.constant dense<0.000000e+00> : vector<128xf32>
    %50 = vector.multi_reduction <add>, %49, %cst_32 [0] : vector<256x128xf32> to vector<128xf32>
    %51 = vector.shape_cast %50 : vector<128xf32> to vector<1x128xf32>
    %cst_33 = arith.constant 3.906250e-03 : f32
    %52 = vector.broadcast %cst_33 : f32 to vector<1x128xf32>
    %53 = arith.mulf %51, %52 : vector<1x128xf32>
    %cst_34 = arith.constant 9.99999974E-6 : f32
    %54 = vector.broadcast %cst_34 : f32 to vector<1x128xf32>
    %55 = arith.addf %53, %54 : vector<1x128xf32>
    %56 = math.rsqrt %55 : vector<1x128xf32>
    %57 = arith.mulf %40, %56 : vector<1x128xf32>
    %58 = vector.broadcast %57 : vector<1x128xf32> to vector<256x128xf32>
    %59 = arith.mulf %48, %58 : vector<256x128xf32>
    %60 = vector.broadcast %42 : vector<1x128xf32> to vector<256x128xf32>
    %61 = arith.addf %59, %60 : vector<256x128xf32>
    %cst_35 = arith.constant 0.000000e+00 : f32
    %62 = vector.broadcast %cst_35 : f32 to vector<256x128xf32>
    %63 = arith.maximumf %61, %62 : vector<256x128xf32>
    %64 = arith.truncf %63 : vector<256x128xf32> to vector<256x128xbf16>
    %c0_36 = arith.constant 0 : index
    %c0_37 = arith.constant 0 : index
    %65 = vector.load %arg10[%c0_36, %c0_37] : memref<256x128xbf16, #tpu.memory_space<vmem>>, vector<256x128xbf16>
    tpu.vector_store %arg10[%c0_36, %c0_37], %64 {strides = array<i32>} : memref<256x128xbf16, #tpu.memory_space<vmem>>, vector<256x128xbf16>,
    %c1_i32 = arith.constant 1 : i32
    %66 = arith.cmpi eq, %arg0, %c1_i32 : i32
    %67 = arith.extui %66 : i1 to i32
    %c0_i32_38 = arith.constant 0 : i32
    %68 = arith.cmpi ne, %67, %c0_i32_38 : i32
    scf.if %68 {
      %c0_39 = arith.constant 0 : index
      %c0_40 = arith.constant 0 : index
      %69 = vector.load %arg9[%c0_39, %c0_40] : memref<256x128xf32, #tpu.memory_space<vmem>>, vector<256x128xf32>
      tpu.vector_store %arg9[%c0_39, %c0_40], %63 {strides = array<i32>} : memref<256x128xf32, #tpu.memory_space<vmem>>, vector<256x128xf32>,
    } else {
    }
    return
  }
  func.func @transform_0(%arg0: i32) -> (i32, i32) {
    %c0_i32 = arith.constant 0 : i32
    %c0_i32_0 = arith.constant 0 : i32
    %c0_i32_1 = arith.constant 0 : i32
    return %c0_i32, %c0_i32_0 : i32, i32
  }
  func.func @transform_1(%arg0: i32) -> (i32, i32) {
    %c0_i32 = arith.constant 0 : i32
    %c0_i32_0 = arith.constant 0 : i32
    %c0_i32_1 = arith.constant 0 : i32
    return %c0_i32, %c0_i32_0 : i32, i32
  }
  func.func @transform_2(%arg0: i32) -> (i32, i32, i32) {
    %c0_i32 = arith.constant 0 : i32
    %c0_i32_0 = arith.constant 0 : i32
    %c0_i32_1 = arith.constant 0 : i32
    return %arg0, %c0_i32, %c0_i32_0 : i32, i32, i32
  }
  func.func @transform_3(%arg0: i32) -> (i32, i32, i32) {
    %c0_i32 = arith.constant 0 : i32
    %c0_i32_0 = arith.constant 0 : i32
    %c0_i32_1 = arith.constant 0 : i32
    return %arg0, %c0_i32, %c0_i32_0 : i32, i32, i32
  }
  func.func @transform_4(%arg0: i32) -> (i32, i32, i32) {
    %c0_i32 = arith.constant 0 : i32
    %c0_i32_0 = arith.constant 0 : i32
    %c0_i32_1 = arith.constant 0 : i32
    return %arg0, %c0_i32, %c0_i32_0 : i32, i32, i32
  }
  func.func @transform_5(%arg0: i32) -> (i32, i32, i32) {
    %c0_i32 = arith.constant 0 : i32
    %c0_i32_0 = arith.constant 0 : i32
    %c0_i32_1 = arith.constant 0 : i32
    return %arg0, %c0_i32, %c0_i32_0 : i32, i32, i32
  }
  func.func @transform_6(%arg0: i32) -> (i32, i32, i32) {
    %c0_i32 = arith.constant 0 : i32
    %c0_i32_0 = arith.constant 0 : i32
    %c0_i32_1 = arith.constant 0 : i32
    return %arg0, %c0_i32, %c0_i32_0 : i32, i32, i32
  }
  func.func @transform_7(%arg0: i32) -> (i32, i32, i32) {
    %c0_i32 = arith.constant 0 : i32
    %c0_i32_0 = arith.constant 0 : i32
    %c0_i32_1 = arith.constant 0 : i32
    return %arg0, %c0_i32, %c0_i32_0 : i32, i32, i32
  }
  func.func @transform_8(%arg0: i32) -> (i32, i32) {
    %c0_i32 = arith.constant 0 : i32
    %c0_i32_0 = arith.constant 0 : i32
    %c0_i32_1 = arith.constant 0 : i32
    return %c0_i32, %c0_i32_0 : i32, i32
  }
}

</mosaic_0001>

<llo_original>
// kernel: tpu_custom_call.1
$region0: #{tpu_custom_call.1}
  #allocation0 [shape = 'u32[]', space=smem, size = 0x4, offset = 0x4, fixed_abs, tag = 'smem constant byte address 0x4 - core index']
  #allocation1 [shape = 'u32[144,128]{1,0:T(1,128)}', space=vmem, size = 0x12000, scoped, tag = 'internal scratch']
  #allocation2 [shape = 'bf16[256,128]{1,0:T(16,128)(2,1)}', space=vmem, size = 0x10000, scoped, tag = 'scratch operand']
  %s0 = inlined_call_operand.hbm [shape: bf16[256,256], index: 0, kind: input, shape index: {}]
  %s1 = inlined_call_operand.hbm [shape: bf16[256,128], index: 1, kind: input, shape index: {}]
  %s2 = inlined_call_operand.hbm [shape: bf16[2,128,128], index: 2, kind: input, shape index: {}]
  %s3 = inlined_call_operand.hbm [shape: bf16[2,128,128], index: 3, kind: input, shape index: {}]
  %s4 = inlined_call_operand.vmem [shape: f32[2,1,128], index: 4, kind: input, shape index: {}]
  %s5 = inlined_call_operand.vmem [shape: f32[2,1,128], index: 5, kind: input, shape index: {}]
  %s6 = inlined_call_operand.vmem [shape: f32[2,1,128], index: 6, kind: input, shape index: {}]
  %s7 = inlined_call_operand.vmem [shape: f32[2,1,128], index: 7, kind: input, shape index: {}]
  %s8 = inlined_call_operand.hbm [shape: f32[256,128], index: 8, kind: output, shape index: {}]
  %s9 = sld [smem:[#allocation0]]
  $region89: #{tpu_custom_call.1} parent=0
    _
  %s11 = ssub.s32 1, %s9
  %s12 = scalar_select 0, %s11, %s9
  $region1: #{tpu_custom_call.1} parent=0
    #allocation3 [shape = 'u8[131072]{0}', space=vmem, size = 0x20000, scoped, tag = 'input window, operand 0, single buffered']
    #allocation4 [shape = 's32[2]{0}', space=sflag, size = 0x8, scoped, tag = 'scoped memory for tpu_custom_call.1']
    #allocation5 [shape = 's32[2]{0}', space=sflag, size = 0x8, scoped, tag = 'scoped memory for tpu_custom_call.1']
    #allocation6 [shape = 'u8[65536]{0}', space=vmem, size = 0x10000, scoped, tag = 'input window, operand 1, single buffered']
    #allocation7 [shape = 's32[1]{0}', space=sflag, size = 0x4, scoped, tag = 'scoped memory for tpu_custom_call.1']
    #allocation8 [shape = 'u8[65536]{0}', space=vmem, size = 0x10000, scoped, tag = 'input window, operand 2']
    #allocation9 [shape = 'u8[65536]{0}', space=vmem, size = 0x10000, scoped, tag = 'input window, operand 3']
    #allocation10 [shape = 'u8[131072]{0}', space=vmem, size = 0x20000, scoped, tag = 'output window, operand 0, single buffered']
    %13 = vsyncpa [#allocation4], 0
    %14 = vsyncpa [#allocation7], 0
    %15 = vsyncpa [#allocation5], 0
    loop: start=0, step=1, limit=4
    $region2: #{tpu_custom_call.1} parent=1 // loop_pre_header
      _
    $region3: #{tpu_custom_call.1} parent=1 // loop_header
      %s17 = sphi 0, %s21
      %p18 = scmp.ge.s32.totalorder %s17, 4
      %s25 = sphi 0, %s25
      %s27 = sphi 0, %s25
      %s28 = sphi 0, %s27
      %s42 = sphi 0, %s28
      %s46 = sphi 0, %s46
      %s48 = sphi 0, %s46
      %s49 = sphi 0, %s48
      %s63 = sphi 0, %s49
      %s69 = sphi 0, %s71
      %s72 = sphi 0, %s69
      %s73 = sphi 0, %s72
      %s89 = sphi 0, %s73
      %s95 = sphi 0, %s97
      %s98 = sphi 0, %s95
      %s99 = sphi 0, %s98
      %s115 = sphi 0, %s99
      %s121 = sphi 0, %s123
      %s124 = sphi 0, %s121
      %s125 = sphi 0, %s124
      %s141 = sphi 0, %s125
      %s147 = sphi 0, %s149
      %s150 = sphi 0, %s147
      %s151 = sphi 0, %s150
      %s167 = sphi 0, %s151
      %s173 = sphi 0, %s175
      %s176 = sphi 0, %s173
      %s177 = sphi 0, %s176
      %s193 = sphi 0, %s177
      %s199 = sphi 0, %s201
      %s202 = sphi 0, %s199
      %s203 = sphi 0, %s202
      %s219 = sphi 0, %s203
      %s223 = sphi 0, %s223
      %s225 = sphi 0, %s223
      %s226 = sphi 0, %s225
      %s240 = sphi 0, %s226
    $region4: #{tpu_custom_call.1} parent=1 // loop_header_branch
      %20 = sbr.rel (%p18) target = $region8
    $region5: #{tpu_custom_call.1} parent=1 // loop_body
      %s22 = ssub.s32 %s17, 1
      %s23 = ssub.s32 %s17, 2
      %s24 = sadd.s32 %s17, 1
      %s26 = sadd.s32 %s25, 1
      %p29 = scmp.eq.s32.totalorder %s17, 1
      %p30 = scmp.ne.s32.totalorder %s25, %s27
      %p31 = scmp.eq.s32.totalorder %s17, 0
      %p32 = por %p30, %p31
      %p33 = scmp.ne.s32.totalorder %s25, %s27
      %p34 = scmp.eq.s32.totalorder %s22, 1
      %p35 = por %p33, %p34
      %p36 = scmp.ne.s32.totalorder %s27, %s28
      %p37 = scmp.eq.s32.totalorder %s22, 0
      %p38 = por %p36, %p37
      %p39 = scmp.ne.s32.totalorder %s27, %s28
      %p40 = scmp.eq.s32.totalorder %s23, 1
      %p41 = por %p39, %p40
      %p43 = scmp.ne.s32.totalorder %s28, %s42
      %p44 = scmp.eq.s32.totalorder %s23, 0
      %p45 = por %p43, %p44
      %s47 = sadd.s32 %s46, 1
      %p50 = scmp.eq.s32.totalorder %s17, 1
      %p51 = scmp.ne.s32.totalorder %s46, %s48
      %p52 = scmp.eq.s32.totalorder %s17, 0
      %p53 = por %p51, %p52
      %p54 = scmp.ne.s32.totalorder %s46, %s48
      %p55 = scmp.eq.s32.totalorder %s22, 1
      %p56 = por %p54, %p55
      %p57 = scmp.ne.s32.totalorder %s48, %s49
      %p58 = scmp.eq.s32.totalorder %s22, 0
      %p59 = por %p57, %p58
      %p60 = scmp.ne.s32.totalorder %s48, %s49
      %p61 = scmp.eq.s32.totalorder %s23, 1
      %p62 = por %p60, %p61
      %p64 = scmp.ne.s32.totalorder %s49, %s63
      %p65 = scmp.eq.s32.totalorder %s23, 0
      %p66 = por %p64, %p65
      %s67 = ssub.s32 %s17, %s24
      %p68 = scmp.eq.s32.totalorder %s67, 0
      %s70 = sadd.s32 %s69, 1
      %s71 = scalar_select %p68, %s69, %s70
      %p74 = pneg %p68
      %p75 = scmp.eq.s32.totalorder %s17, 1
      %p76 = por %p74, %p75
      %p77 = scmp.ne.s32.totalorder %s69, %s72
      %p78 = scmp.eq.s32.totalorder %s17, 0
      %p79 = por %p77, %p78
      %p80 = scmp.ne.s32.totalorder %s69, %s72
      %p81 = scmp.eq.s32.totalorder %s22, 1
      %p82 = por %p80, %p81
      %p83 = scmp.ne.s32.totalorder %s72, %s73
      %p84 = scmp.eq.s32.totalorder %s22, 0
      %p85 = por %p83, %p84
      %p86 = scmp.ne.s32.totalorder %s72, %s73
      %p87 = scmp.eq.s32.totalorder %s23, 1
      %p88 = por %p86, %p87
      %p90 = scmp.ne.s32.totalorder %s73, %s89
      %p91 = scmp.eq.s32.totalorder %s23, 0
      %p92 = por %p90, %p91
      %s93 = ssub.s32 %s17, %s24
      %p94 = scmp.eq.s32.totalorder %s93, 0
      %s96 = sadd.s32 %s95, 1
      %s97 = scalar_select %p94, %s95, %s96
      %p100 = pneg %p94
      %p101 = scmp.eq.s32.totalorder %s17, 1
      %p102 = por %p100, %p101
      %p103 = scmp.ne.s32.totalorder %s95, %s98
      %p104 = scmp.eq.s32.totalorder %s17, 0
      %p105 = por %p103, %p104
      %p106 = scmp.ne.s32.totalorder %s95, %s98
      %p107 = scmp.eq.s32.totalorder %s22, 1
      %p108 = por %p106, %p107
      %p109 = scmp.ne.s32.totalorder %s98, %s99
      %p110 = scmp.eq.s32.totalorder %s22, 0
      %p111 = por %p109, %p110
      %p112 = scmp.ne.s32.totalorder %s98, %s99
      %p113 = scmp.eq.s32.totalorder %s23, 1
      %p114 = por %p112, %p113
      %p116 = scmp.ne.s32.totalorder %s99, %s115
      %p117 = scmp.eq.s32.totalorder %s23, 0
      %p118 = por %p116, %p117
      %s119 = ssub.s32 %s17, %s24
      %p120 = scmp.eq.s32.totalorder %s119, 0
      %s122 = sadd.s32 %s121, 1
      %s123 = scalar_select %p120, %s121, %s122
      %p126 = pneg %p120
      %p127 = scmp.eq.s32.totalorder %s17, 1
      %p128 = por %p126, %p127
      %p129 = scmp.ne.s32.totalorder %s121, %s124
      %p130 = scmp.eq.s32.totalorder %s17, 0
      %p131 = por %p129, %p130
      %p132 = scmp.ne.s32.totalorder %s121, %s124
      %p133 = scmp.eq.s32.totalorder %s22, 1
      %p134 = por %p132, %p133
      %p135 = scmp.ne.s32.totalorder %s124, %s125
      %p136 = scmp.eq.s32.totalorder %s22, 0
      %p137 = por %p135, %p136
      %p138 = scmp.ne.s32.totalorder %s124, %s125
      %p139 = scmp.eq.s32.totalorder %s23, 1
      %p140 = por %p138, %p139
      %p142 = scmp.ne.s32.totalorder %s125, %s141
      %p143 = scmp.eq.s32.totalorder %s23, 0
      %p144 = por %p142, %p143
      %s145 = ssub.s32 %s17, %s24
      %p146 = scmp.eq.s32.totalorder %s145, 0
      %s148 = sadd.s32 %s147, 1
      %s149 = scalar_select %p146, %s147, %s148
      %p152 = pneg %p146
      %p153 = scmp.eq.s32.totalorder %s17, 1
      %p154 = por %p152, %p153
      %p155 = scmp.ne.s32.totalorder %s147, %s150
      %p156 = scmp.eq.s32.totalorder %s17, 0
      %p157 = por %p155, %p156
      %p158 = scmp.ne.s32.totalorder %s147, %s150
      %p159 = scmp.eq.s32.totalorder %s22, 1
      %p160 = por %p158, %p159
      %p161 = scmp.ne.s32.totalorder %s150, %s151
      %p162 = scmp.eq.s32.totalorder %s22, 0
      %p163 = por %p161, %p162
      %p164 = scmp.ne.s32.totalorder %s150, %s151
      %p165 = scmp.eq.s32.totalorder %s23, 1
      %p166 = por %p164, %p165
      %p168 = scmp.ne.s32.totalorder %s151, %s167
      %p169 = scmp.eq.s32.totalorder %s23, 0
      %p170 = por %p168, %p169
      %s171 = ssub.s32 %s17, %s24
      %p172 = scmp.eq.s32.totalorder %s171, 0
      %s174 = sadd.s32 %s173, 1
      %s175 = scalar_select %p172, %s173, %s174
      %p178 = pneg %p172
      %p179 = scmp.eq.s32.totalorder %s17, 1
      %p180 = por %p178, %p179
      %p181 = scmp.ne.s32.totalorder %s173, %s176
      %p182 = scmp.eq.s32.totalorder %s17, 0
      %p183 = por %p181, %p182
      %p184 = scmp.ne.s32.totalorder %s173, %s176
      %p185 = scmp.eq.s32.totalorder %s22, 1
      %p186 = por %p184, %p185
      %p187 = scmp.ne.s32.totalorder %s176, %s177
      %p188 = scmp.eq.s32.totalorder %s22, 0
      %p189 = por %p187, %p188
      %p190 = scmp.ne.s32.totalorder %s176, %s177
      %p191 = scmp.eq.s32.totalorder %s23, 1
      %p192 = por %p190, %p191
      %p194 = scmp.ne.s32.totalorder %s177, %s193
      %p195 = scmp.eq.s32.totalorder %s23, 0
      %p196 = por %p194, %p195
      %s197 = ssub.s32 %s17, %s24
      %p198 = scmp.eq.s32.totalorder %s197, 0
      %s200 = sadd.s32 %s199, 1
      %s201 = scalar_select %p198, %s199, %s200
      %p204 = pneg %p198
      %p205 = scmp.eq.s32.totalorder %s17, 1
      %p206 = por %p204, %p205
      %p207 = scmp.ne.s32.totalorder %s199, %s202
      %p208 = scmp.eq.s32.totalorder %s17, 0
      %p209 = por %p207, %p208
      %p210 = scmp.ne.s32.totalorder %s199, %s202
      %p211 = scmp.eq.s32.totalorder %s22, 1
      %p212 = por %p210, %p211
      %p213 = scmp.ne.s32.totalorder %s202, %s203
      %p214 = scmp.eq.s32.totalorder %s22, 0
      %p215 = por %p213, %p214
      %p216 = scmp.ne.s32.totalorder %s202, %s203
      %p217 = scmp.eq.s32.totalorder %s23, 1
      %p218 = por %p216, %p217
      %p220 = scmp.ne.s32.totalorder %s203, %s219
      %p221 = scmp.eq.s32.totalorder %s23, 0
      %p222 = por %p220, %p221
      %s224 = sadd.s32 %s223, 1
      %p227 = scmp.eq.s32.totalorder %s17, 1
      %p228 = scmp.ne.s32.totalorder %s223, %s225
      %p229 = scmp.eq.s32.totalorder %s17, 0
      %p230 = por %p228, %p229
      %p231 = scmp.ne.s32.totalorder %s223, %s225
      %p232 = scmp.eq.s32.totalorder %s22, 1
      %p233 = por %p231, %p232
      %p234 = scmp.ne.s32.totalorder %s225, %s226
      %p235 = scmp.eq.s32.totalorder %s22, 0
      %p236 = por %p234, %p235
      %p237 = scmp.ne.s32.totalorder %s225, %s226
      %p238 = scmp.eq.s32.totalorder %s23, 1
      %p239 = por %p237, %p238
      %p241 = scmp.ne.s32.totalorder %s226, %s240
      %p242 = scmp.eq.s32.totalorder %s23, 0
      %p243 = por %p241, %p242
      %p244 = scmp.le.s32.totalorder 1, %s17
      %p245 = scmp.lt.s32.totalorder %s17, 3
      %p246 = pnand %p244, %p245
      %p247 = pneg %p246
      // Predicated region
      $region9: #{tpu_custom_call.1} parent=5 // pred_check
        _
      $region10: #{tpu_custom_call.1} parent=5 // pred_check_branch
        %249 = sbr.rel (%p246) target = $region12
      $region11: #{tpu_custom_call.1} parent=5 // pred_region
        %s250 = ssub.s32 %s17, 1
        // Predicated region
        $region13: #{tpu_custom_call.1} parent=11 // pred_check
          %p251 = pneg %p38
        $region14: #{tpu_custom_call.1} parent=11 // pred_check_branch
          %253 = sbr.rel (%p251) target = $region16
        $region15: #{tpu_custom_call.1} parent=11 // pred_region
          %s255 = ssub.s32 4096, 4096
          %256 = vsyncadd [#allocation4], %s255
          %s257 = sshll.u32 [#allocation3], 4
          %s258 = int_to_ptr.vmem [resolvable:$true] %s257
          %263 = dma.hbm_to_vmem [thread:$0]  %s0, 4096, %s258, [#allocation4], 128, 128, 8
        $region16: #{tpu_custom_call.1} parent=11 // pred_fallthru
          _
        // Predicated region
        $region17: #{tpu_custom_call.1} parent=11 // pred_check
          %p264 = pneg %p59
        $region18: #{tpu_custom_call.1} parent=11 // pred_check_branch
          %266 = sbr.rel (%p264) target = $region20
        $region19: #{tpu_custom_call.1} parent=11 // pred_region
          %s268 = ssub.s32 2048, 2048
          %269 = vsyncadd [#allocation7], %s268
          %s270 = sshll.u32 [#allocation6], 4
          %s271 = int_to_ptr.vmem [resolvable:$true] %s270
          %276 = dma.hbm_to_vmem [thread:$0]  %s1, 2048, %s271, [#allocation7], 64, 64, 4
        $region20: #{tpu_custom_call.1} parent=11 // pred_fallthru
          _
      $region12: #{tpu_custom_call.1} parent=5 // pred_fallthru
        _
      %p277 = scmp.lt.s32.totalorder %s17, 2
      // Predicated region
      $region21: #{tpu_custom_call.1} parent=5 // pred_check
        %p278 = pneg %p277
      $region22: #{tpu_custom_call.1} parent=5 // pred_check_branch
        %280 = sbr.rel (%p278) target = $region24
      $region23: #{tpu_custom_call.1} parent=5 // pred_region
        // Predicated region
        $region25: #{tpu_custom_call.1} parent=23 // pred_check
          %p281 = pneg %p79
        $region26: #{tpu_custom_call.1} parent=23 // pred_check_branch
          %283 = sbr.rel (%p281) target = $region28
        $region27: #{tpu_custom_call.1} parent=23 // pred_region
          %s284 = sand.u32 %s17, 1
          %s285 = scalar_lea.sflag [#allocation4], %s284
          %s286 = sand.u32 %s69, 1
          %s287 = smul.addr %s286, 64
          %s288 = scalar_lea.vmem [#allocation8], %s287
          %s290 = ssub.s32 1024, 1024
          %291 = vsyncadd %s285, %s290
          %s292 = smul.addr %s17, 16
          %s293 = smul.addr %s292, 64
          %s294 = scalar_lea.hbm %s2, %s293
          %s295 = sshll.u32 %s288, 4
          %s296 = int_to_ptr.vmem [resolvable:$true] %s295
          %301 = dma.hbm_to_vmem [thread:$0]  %s294, 1024, %s296, %s285, 64, 64, 4
        $region28: #{tpu_custom_call.1} parent=23 // pred_fallthru
          _
        // Predicated region
        $region29: #{tpu_custom_call.1} parent=23 // pred_check
          %p302 = pneg %p105
        $region30: #{tpu_custom_call.1} parent=23 // pred_check_branch
          %304 = sbr.rel (%p302) target = $region32
        $region31: #{tpu_custom_call.1} parent=23 // pred_region
          %s305 = sand.u32 %s17, 1
          %s306 = scalar_lea.sflag [#allocation4], %s305
          %s307 = sand.u32 %s95, 1
          %s308 = smul.addr %s307, 64
          %s309 = scalar_lea.vmem [#allocation9], %s308
          %s311 = ssub.s32 1024, 1024
          %312 = vsyncadd %s306, %s311
          %s313 = smul.addr %s17, 16
          %s314 = smul.addr %s313, 64
          %s315 = scalar_lea.hbm %s3, %s314
          %s316 = sshll.u32 %s309, 4
          %s317 = int_to_ptr.vmem [resolvable:$true] %s316
          %322 = dma.hbm_to_vmem [thread:$0]  %s315, 1024, %s317, %s306, 64, 64, 4
        $region32: #{tpu_custom_call.1} parent=23 // pred_fallthru
          _
        // Predicated region
        $region33: #{tpu_custom_call.1} parent=23 // pred_check
          %p323 = pneg %p131
        $region34: #{tpu_custom_call.1} parent=23 // pred_check_branch
          %325 = sbr.rel (%p323) target = $region36
        $region35: #{tpu_custom_call.1} parent=23 // pred_region
          %p326 = scmp.lt.s32.totalorder %s17, 1
          %s327 = scalar_select %p326, %s17, 1
          %s328 = scalar_lea.vmem %s4, %s327
        $region36: #{tpu_custom_call.1} parent=23 // pred_fallthru
          _
        // Predicated region
        $region37: #{tpu_custom_call.1} parent=23 // pred_check
          %p329 = pneg %p157
        $region38: #{tpu_custom_call.1} parent=23 // pred_check_branch
          %331 = sbr.rel (%p329) target = $region40
        $region39: #{tpu_custom_call.1} parent=23 // pred_region
          %p332 = scmp.lt.s32.totalorder %s17, 1
          %s333 = scalar_select %p332, %s17, 1
          %s334 = scalar_lea.vmem %s5, %s333
        $region40: #{tpu_custom_call.1} parent=23 // pred_fallthru
          _
        // Predicated region
        $region41: #{tpu_custom_call.1} parent=23 // pred_check
          %p335 = pneg %p183
        $region42: #{tpu_custom_call.1} parent=23 // pred_check_branch
          %337 = sbr.rel (%p335) target = $region44
        $region43: #{tpu_custom_call.1} parent=23 // pred_region
          %p338 = scmp.lt.s32.totalorder %s17, 1
          %s339 = scalar_select %p338, %s17, 1
          %s340 = scalar_lea.vmem %s6, %s339
        $region44: #{tpu_custom_call.1} parent=23 // pred_fallthru
          _
        // Predicated region
        $region45: #{tpu_custom_call.1} parent=23 // pred_check
          %p341 = pneg %p209
        $region46: #{tpu_custom_call.1} parent=23 // pred_check_branch
          %343 = sbr.rel (%p341) target = $region48
        $region47: #{tpu_custom_call.1} parent=23 // pred_region
          %p344 = scmp.lt.s32.totalorder %s17, 1
          %s345 = scalar_select %p344, %s17, 1
          %s346 = scalar_lea.vmem %s7, %s345
        $region48: #{tpu_custom_call.1} parent=23 // pred_fallthru
          _
      $region24: #{tpu_custom_call.1} parent=5 // pred_fallthru
        _
      %p347 = scmp.le.s32.totalorder 1, %s17
      %p348 = scmp.lt.s32.totalorder %s17, 3
      %p349 = pnand %p347, %p348
      %p350 = pneg %p349
      // Predicated region
      $region49: #{tpu_custom_call.1} parent=5 // pred_check
        _
      $region50: #{tpu_custom_call.1} parent=5 // pred_check_branch
        %352 = sbr.rel (%p349) target = $region52
      $region51: #{tpu_custom_call.1} parent=5 // pred_region
        %s353 = ssub.s32 %s17, 1
        // Predicated region
        $region53: #{tpu_custom_call.1} parent=51 // pred_check
          %p354 = pneg %p38
        $region54: #{tpu_custom_call.1} parent=51 // pred_check_branch
          %356 = sbr.rel (%p354) target = $region56
        $region55: #{tpu_custom_call.1} parent=51 // pred_region
          %357 = dma.done [#allocation4], 4096
        $region56: #{tpu_custom_call.1} parent=51 // pred_fallthru
          _
        // Predicated region
        $region57: #{tpu_custom_call.1} parent=51 // pred_check
          %p358 = pneg %p59
        $region58: #{tpu_custom_call.1} parent=51 // pred_check_branch
          %360 = sbr.rel (%p358) target = $region60
        $region59: #{tpu_custom_call.1} parent=51 // pred_region
          %361 = dma.done [#allocation7], 2048
        $region60: #{tpu_custom_call.1} parent=51 // pred_fallthru
          _
        %s362 = sand.u32 %s22, 1
        %s363 = scalar_lea.sflag [#allocation4], %s362
        %s364 = sand.u32 %s72, 1
        %s365 = smul.addr %s364, 64
        %s366 = scalar_lea.vmem [#allocation8], %s365
        // Predicated region
        $region61: #{tpu_custom_call.1} parent=51 // pred_check
          %p367 = pneg %p85
        $region62: #{tpu_custom_call.1} parent=51 // pred_check_branch
          %369 = sbr.rel (%p367) target = $region64
        $region63: #{tpu_custom_call.1} parent=51 // pred_region
          %370 = dma.done %s363, 1024
        $region64: #{tpu_custom_call.1} parent=51 // pred_fallthru
          _
        %s371 = sand.u32 %s22, 1
        %s372 = scalar_lea.sflag [#allocation4], %s371
        %s373 = sand.u32 %s98, 1
        %s374 = smul.addr %s373, 64
        %s375 = scalar_lea.vmem [#allocation9], %s374
        // Predicated region
        $region65: #{tpu_custom_call.1} parent=51 // pred_check
          %p376 = pneg %p111
        $region66: #{tpu_custom_call.1} parent=51 // pred_check_branch
          %378 = sbr.rel (%p376) target = $region68
        $region67: #{tpu_custom_call.1} parent=51 // pred_region
          %379 = dma.done %s372, 1024
        $region68: #{tpu_custom_call.1} parent=51 // pred_fallthru
          _
        %p380 = pneg %p38
        %p381 = pneg %p35
        %p382 = pneg %p59
        %p383 = pneg %p56
        %s384 = sand.u32 %s22, 1
        %s385 = scalar_lea.sflag [#allocation4], %s384
        %s386 = sand.u32 %s72, 1
        %s387 = smul.addr %s386, 64
        %s388 = scalar_lea.vmem [#allocation8], %s387
        %p389 = pneg %p85
        %p390 = pneg %p82
        %s391 = sand.u32 %s22, 1
        %s392 = scalar_lea.sflag [#allocation4], %s391
        %s393 = sand.u32 %s98, 1
        %s394 = smul.addr %s393, 64
        %s395 = scalar_lea.vmem [#allocation9], %s394
        %p396 = pneg %p111
        %p397 = pneg %p108
        %p398 = scmp.lt.s32.totalorder %s22, 1
        %s399 = scalar_select %p398, %s22, 1
        %s400 = scalar_lea.vmem %s4, %s399
        %p401 = pneg %p137
        %p402 = pneg %p134
        %p403 = scmp.lt.s32.totalorder %s22, 1
        %s404 = scalar_select %p403, %s22, 1
        %s405 = scalar_lea.vmem %s5, %s404
        %p406 = pneg %p163
        %p407 = pneg %p160
        %p408 = scmp.lt.s32.totalorder %s22, 1
        %s409 = scalar_select %p408, %s22, 1
        %s410 = scalar_lea.vmem %s6, %s409
        %p411 = pneg %p189
        %p412 = pneg %p186
        %p413 = scmp.lt.s32.totalorder %s22, 1
        %s414 = scalar_select %p413, %s22, 1
        %s415 = scalar_lea.vmem %s7, %s414
        %p416 = pneg %p215
        %p417 = pneg %p212
        %p418 = pneg %p236
        %p419 = pneg %p233
        %p420 = scmp.lt.s32.totalorder %s22, 1
        %s421 = scalar_select %p420, %s22, 1
        %s422 = scalar_lea.vmem %s4, %s421
        %p423 = scmp.lt.s32.totalorder %s22, 1
        %s424 = scalar_select %p423, %s22, 1
        %s425 = scalar_lea.vmem %s5, %s424
        %p426 = scmp.lt.s32.totalorder %s22, 1
        %s427 = scalar_select %p426, %s22, 1
        %s428 = scalar_lea.vmem %s6, %s427
        %p429 = scmp.lt.s32.totalorder %s22, 1
        %s430 = scalar_select %p429, %s22, 1
        %s431 = scalar_lea.vmem %s7, %s430
        %p433 = scmp.eq.s32.totalorder %s22, 0
        // Predicated region
        $region69: #{tpu_custom_call.1} parent=51 // pred_check
          %p434 = pneg %p433
        $region70: #{tpu_custom_call.1} parent=51 // pred_check_branch
          %436 = sbr.rel (%p434) target = $region72
        $region71: #{tpu_custom_call.1} parent=51 // pred_region
          %v437 = vld [vmem:[#allocation6] sm:$0xf]
          %v438 = vld [vmem:[#allocation6 + $0x4] sm:$0xf]
          %v439 = vld [vmem:[#allocation6 + $0x8] sm:$0xf]
          %v440 = vld [vmem:[#allocation6 + $0xc] sm:$0xf]
          %v441 = vld [vmem:[#allocation6 + $0x10] sm:$0xf]
          %v442 = vld [vmem:[#allocation6 + $0x14] sm:$0xf]
          %v443 = vld [vmem:[#allocation6 + $0x18] sm:$0xf]
          %v444 = vld [vmem:[#allocation6 + $0x1c] sm:$0xf]
          %v445 = vld [vmem:[#allocation6 + $0x20] sm:$0xf]
          %v446 = vld [vmem:[#allocation6 + $0x24] sm:$0xf]
          %v447 = vld [vmem:[#allocation6 + $0x28] sm:$0xf]
          %v448 = vld [vmem:[#allocation6 + $0x2c] sm:$0xf]
          %v449 = vld [vmem:[#allocation6 + $0x30] sm:$0xf]
          %v450 = vld [vmem:[#allocation6 + $0x34] sm:$0xf]
          %v451 = vld [vmem:[#allocation6 + $0x38] sm:$0xf]
          %v452 = vld [vmem:[#allocation6 + $0x3c] sm:$0xf]
          %v453 = vld [vmem:[#allocation6 + $0x40] sm:$0xf]
          %v454 = vld [vmem:[#allocation6 + $0x44] sm:$0xf]
          %v455 = vld [vmem:[#allocation6 + $0x48] sm:$0xf]
          %v456 = vld [vmem:[#allocation6 + $0x4c] sm:$0xf]
          %v457 = vld [vmem:[#allocation6 + $0x50] sm:$0xf]
          %v458 = vld [vmem:[#allocation6 + $0x54] sm:$0xf]
          %v459 = vld [vmem:[#allocation6 + $0x58] sm:$0xf]
          %v460 = vld [vmem:[#allocation6 + $0x5c] sm:$0xf]
          %v461 = vld [vmem:[#allocation6 + $0x60] sm:$0xf]
          %v462 = vld [vmem:[#allocation6 + $0x64] sm:$0xf]
          %v463 = vld [vmem:[#allocation6 + $0x68] sm:$0xf]
          %v464 = vld [vmem:[#allocation6 + $0x6c] sm:$0xf]
          %v465 = vld [vmem:[#allocation6 + $0x70] sm:$0xf]
          %v466 = vld [vmem:[#allocation6 + $0x74] sm:$0xf]
          %v467 = vld [vmem:[#allocation6 + $0x78] sm:$0xf]
          %v468 = vld [vmem:[#allocation6 + $0x7c] sm:$0xf]
          %v501 = vunpack.c.l.b16 %v437
          %v502 = vunpack.c.l.b16 %v438
          %v503 = vunpack.c.l.b16 %v439
          %v504 = vunpack.c.l.b16 %v440
          %v505 = vunpack.c.l.b16 %v441
          %v506 = vunpack.c.l.b16 %v442
          %v507 = vunpack.c.l.b16 %v443
          %v508 = vunpack.c.l.b16 %v444
          %v509 = vunpack.c.l.b16 %v445
          %v510 = vunpack.c.l.b16 %v446
          %v511 = vunpack.c.l.b16 %v447
          %v512 = vunpack.c.l.b16 %v448
          %v513 = vunpack.c.l.b16 %v449
          %v514 = vunpack.c.l.b16 %v450
          %v515 = vunpack.c.l.b16 %v451
          %v516 = vunpack.c.l.b16 %v452
          %v517 = vunpack.c.l.b16 %v453
          %v518 = vunpack.c.l.b16 %v454
          %v519 = vunpack.c.l.b16 %v455
          %v520 = vunpack.c.l.b16 %v456
          %v521 = vunpack.c.l.b16 %v457
          %v522 = vunpack.c.l.b16 %v458
          %v523 = vunpack.c.l.b16 %v459
          %v524 = vunpack.c.l.b16 %v460
          %v525 = vunpack.c.l.b16 %v461
          %v526 = vunpack.c.l.b16 %v462
          %v527 = vunpack.c.l.b16 %v463
          %v528 = vunpack.c.l.b16 %v464
          %v529 = vunpack.c.l.b16 %v465
          %v530 = vunpack.c.l.b16 %v466
          %v531 = vunpack.c.l.b16 %v467
          %v532 = vunpack.c.l.b16 %v468
          %v533 = vpack.c.b16 %v502, %v501
          %v534 = vpack.c.b16 %v504, %v503
          %v535 = vpack.c.b16 %v506, %v505
          %v536 = vpack.c.b16 %v508, %v507
          %v537 = vpack.c.b16 %v510, %v509
          %v538 = vpack.c.b16 %v512, %v511
          %v539 = vpack.c.b16 %v514, %v513
          %v540 = vpack.c.b16 %v516, %v515
          %v541 = vpack.c.b16 %v518, %v517
          %v542 = vpack.c.b16 %v520, %v519
          %v543 = vpack.c.b16 %v522, %v521
          %v544 = vpack.c.b16 %v524, %v523
          %v545 = vpack.c.b16 %v526, %v525
          %v546 = vpack.c.b16 %v528, %v527
          %v547 = vpack.c.b16 %v530, %v529
          %v548 = vpack.c.b16 %v532, %v531
          %565 = vst [vmem:[#allocation2] sm:$0xff] %v533
          %566 = vst [vmem:[#allocation2 + $0x8] sm:$0xff] %v534
          %567 = vst [vmem:[#allocation2 + $0x10] sm:$0xff] %v535
          %568 = vst [vmem:[#allocation2 + $0x18] sm:$0xff] %v536
          %569 = vst [vmem:[#allocation2 + $0x20] sm:$0xff] %v537
          %570 = vst [vmem:[#allocation2 + $0x28] sm:$0xff] %v538
          %571 = vst [vmem:[#allocation2 + $0x30] sm:$0xff] %v539
          %572 = vst [vmem:[#allocation2 + $0x38] sm:$0xff] %v540
          %573 = vst [vmem:[#allocation2 + $0x40] sm:$0xff] %v541
          %574 = vst [vmem:[#allocation2 + $0x48] sm:$0xff] %v542
          %575 = vst [vmem:[#allocation2 + $0x50] sm:$0xff] %v543
          %576 = vst [vmem:[#allocation2 + $0x58] sm:$0xff] %v544
          %577 = vst [vmem:[#allocation2 + $0x60] sm:$0xff] %v545
          %578 = vst [vmem:[#allocation2 + $0x68] sm:$0xff] %v546
          %579 = vst [vmem:[#allocation2 + $0x70] sm:$0xff] %v547
          %580 = vst [vmem:[#allocation2 + $0x78] sm:$0xff] %v548
        $region72: #{tpu_custom_call.1} parent=51 // pred_fallthru
          _
        %v581 = vld [vmem:[#allocation3] sm:$0xff]
        %v582 = vld [vmem:[#allocation3 + $0x8] sm:$0xff]
        %v583 = vld [vmem:[#allocation3 + $0x10] sm:$0xff]
        %v584 = vld [vmem:[#allocation3 + $0x18] sm:$0xff]
        %v585 = vld [vmem:[#allocation3 + $0x20] sm:$0xff]
        %v586 = vld [vmem:[#allocation3 + $0x28] sm:$0xff]
        %v587 = vld [vmem:[#allocation3 + $0x30] sm:$0xff]
        %v588 = vld [vmem:[#allocation3 + $0x38] sm:$0xff]
        %v589 = vld [vmem:[#allocation3 + $0x40] sm:$0xff]
        %v590 = vld [vmem:[#allocation3 + $0x48] sm:$0xff]
        %v591 = vld [vmem:[#allocation3 + $0x50] sm:$0xff]
        %v592 = vld [vmem:[#allocation3 + $0x58] sm:$0xff]
        %v593 = vld [vmem:[#allocation3 + $0x60] sm:$0xff]
        %v594 = vld [vmem:[#allocation3 + $0x68] sm:$0xff]
        %v595 = vld [vmem:[#allocation3 + $0x70] sm:$0xff]
        %v596 = vld [vmem:[#allocation3 + $0x78] sm:$0xff]
        %v597 = vld [vmem:[#allocation3 + $0x80] sm:$0xff]
        %v598 = vld [vmem:[#allocation3 + $0x88] sm:$0xff]
        %v599 = vld [vmem:[#allocation3 + $0x90] sm:$0xff]
        %v600 = vld [vmem:[#allocation3 + $0x98] sm:$0xff]
        %v601 = vld [vmem:[#allocation3 + $0xa0] sm:$0xff]
        %v602 = vld [vmem:[#allocation3 + $0xa8] sm:$0xff]
        %v603 = vld [vmem:[#allocation3 + $0xb0] sm:$0xff]
        %v604 = vld [vmem:[#allocation3 + $0xb8] sm:$0xff]
        %v605 = vld [vmem:[#allocation3 + $0xc0] sm:$0xff]
        %v606 = vld [vmem:[#allocation3 + $0xc8] sm:$0xff]
        %v607 = vld [vmem:[#allocation3 + $0xd0] sm:$0xff]
        %v608 = vld [vmem:[#allocation3 + $0xd8] sm:$0xff]
        %v609 = vld [vmem:[#allocation3 + $0xe0] sm:$0xff]
        %v610 = vld [vmem:[#allocation3 + $0xe8] sm:$0xff]
        %v611 = vld [vmem:[#allocation3 + $0xf0] sm:$0xff]
        %v612 = vld [vmem:[#allocation3 + $0xf8] sm:$0xff]
        %v613 = vld [vmem:[#allocation2] sm:$0xff]
        %v614 = vld [vmem:[#allocation2 + $0x8] sm:$0xff]
        %v615 = vld [vmem:[#allocation2 + $0x10] sm:$0xff]
        %v616 = vld [vmem:[#allocation2 + $0x18] sm:$0xff]
        %v617 = vld [vmem:[#allocation2 + $0x20] sm:$0xff]
        %v618 = vld [vmem:[#allocation2 + $0x28] sm:$0xff]
        %v619 = vld [vmem:[#allocation2 + $0x30] sm:$0xff]
        %v620 = vld [vmem:[#allocation2 + $0x38] sm:$0xff]
        %v621 = vld [vmem:[#allocation2 + $0x40] sm:$0xff]
        %v622 = vld [vmem:[#allocation2 + $0x48] sm:$0xff]
        %v623 = vld [vmem:[#allocation2 + $0x50] sm:$0xff]
        %v624 = vld [vmem:[#allocation2 + $0x58] sm:$0xff]
        %v625 = vld [vmem:[#allocation2 + $0x60] sm:$0xff]
        %v626 = vld [vmem:[#allocation2 + $0x68] sm:$0xff]
        %v627 = vld [vmem:[#allocation2 + $0x70] sm:$0xff]
        %v628 = vld [vmem:[#allocation2 + $0x78] sm:$0xff]
        %v661 = vunpack.c.l.b16 %v581
        %v662 = vunpack.c.h.b16 %v581
        %v663 = vunpack.c.l.b16 %v582
        %v664 = vunpack.c.h.b16 %v582
        %v665 = vunpack.c.l.b16 %v583
        %v666 = vunpack.c.h.b16 %v583
        %v667 = vunpack.c.l.b16 %v584
        %v668 = vunpack.c.h.b16 %v584
        %v669 = vunpack.c.l.b16 %v585
        %v670 = vunpack.c.h.b16 %v585
        %v671 = vunpack.c.l.b16 %v586
        %v672 = vunpack.c.h.b16 %v586
        %v673 = vunpack.c.l.b16 %v587
        %v674 = vunpack.c.h.b16 %v587
        %v675 = vunpack.c.l.b16 %v588
        %v676 = vunpack.c.h.b16 %v588
        %v677 = vunpack.c.l.b16 %v589
        %v678 = vunpack.c.h.b16 %v589
        %v679 = vunpack.c.l.b16 %v590
        %v680 = vunpack.c.h.b16 %v590
        %v681 = vunpack.c.l.b16 %v591
        %v682 = vunpack.c.h.b16 %v591
        %v683 = vunpack.c.l.b16 %v592
        %v684 = vunpack.c.h.b16 %v592
        %v685 = vunpack.c.l.b16 %v593
        %v686 = vunpack.c.h.b16 %v593
        %v687 = vunpack.c.l.b16 %v594
        %v688 = vunpack.c.h.b16 %v594
        %v689 = vunpack.c.l.b16 %v595
        %v690 = vunpack.c.h.b16 %v595
        %v691 = vunpack.c.l.b16 %v596
        %v692 = vunpack.c.h.b16 %v596
        %v693 = vunpack.c.l.b16 %v597
        %v694 = vunpack.c.h.b16 %v597
        %v695 = vunpack.c.l.b16 %v598
        %v696 = vunpack.c.h.b16 %v598
        %v697 = vunpack.c.l.b16 %v599
        %v698 = vunpack.c.h.b16 %v599
        %v699 = vunpack.c.l.b16 %v600
        %v700 = vunpack.c.h.b16 %v600
        %v701 = vunpack.c.l.b16 %v601
        %v702 = vunpack.c.h.b16 %v601
        %v703 = vunpack.c.l.b16 %v602
        %v704 = vunpack.c.h.b16 %v602
        %v705 = vunpack.c.l.b16 %v603
        %v706 = vunpack.c.h.b16 %v603
        %v707 = vunpack.c.l.b16 %v604
        %v708 = vunpack.c.h.b16 %v604
        %v709 = vunpack.c.l.b16 %v605
        %v710 = vunpack.c.h.b16 %v605
        %v711 = vunpack.c.l.b16 %v606
        %v712 = vunpack.c.h.b16 %v606
        %v713 = vunpack.c.l.b16 %v607
        %v714 = vunpack.c.h.b16 %v607
        %v715 = vunpack.c.l.b16 %v608
        %v716 = vunpack.c.h.b16 %v608
        %v717 = vunpack.c.l.b16 %v609
        %v718 = vunpack.c.h.b16 %v609
        %v719 = vunpack.c.l.b16 %v610
        %v720 = vunpack.c.h.b16 %v610
        %v721 = vunpack.c.l.b16 %v611
        %v722 = vunpack.c.h.b16 %v611
        %v723 = vunpack.c.l.b16 %v612
        %v724 = vunpack.c.h.b16 %v612
        %v725 = vpack.c.b16 %v663, %v661
        %v726 = vpack.c.b16 %v664, %v662
        %v727 = vpack.c.b16 %v667, %v665
        %v728 = vpack.c.b16 %v668, %v666
        %v729 = vpack.c.b16 %v671, %v669
        %v730 = vpack.c.b16 %v672, %v670
        %v731 = vpack.c.b16 %v675, %v673
        %v732 = vpack.c.b16 %v676, %v674
        %v733 = vpack.c.b16 %v679, %v677
        %v734 = vpack.c.b16 %v680, %v678
        %v735 = vpack.c.b16 %v683, %v681
        %v736 = vpack.c.b16 %v684, %v682
        %v737 = vpack.c.b16 %v687, %v685
        %v738 = vpack.c.b16 %v688, %v686
        %v739 = vpack.c.b16 %v691, %v689
        %v740 = vpack.c.b16 %v692, %v690
        %v741 = vpack.c.b16 %v695, %v693
        %v742 = vpack.c.b16 %v696, %v694
        %v743 = vpack.c.b16 %v699, %v697
        %v744 = vpack.c.b16 %v700, %v698
        %v745 = vpack.c.b16 %v703, %v701
        %v746 = vpack.c.b16 %v704, %v702
        %v747 = vpack.c.b16 %v707, %v705
        %v748 = vpack.c.b16 %v708, %v706
        %v749 = vpack.c.b16 %v711, %v709
        %v750 = vpack.c.b16 %v712, %v710
        %v751 = vpack.c.b16 %v715, %v713
        %v752 = vpack.c.b16 %v716, %v714
        %v753 = vpack.c.b16 %v719, %v717
        %v754 = vpack.c.b16 %v720, %v718
        %v755 = vpack.c.b16 %v723, %v721
        %v756 = vpack.c.b16 %v724, %v722
        %789 = vmatprep.subr.bf16.mxu0 0
        %790 = vmatpush1.bf16.msra.mxu0 %v613
        %791 = vmatprep.subr.bf16.mxu0 0
        %792 = vmatpush1.bf16.msra.mxu0 %v614
        %793 = vmatprep.subr.bf16.mxu0 0
        %794 = vmatpush1.bf16.msra.mxu0 %v615
        %795 = vmatprep.subr.bf16.mxu0 0
        %796 = vmatpush1.bf16.msra.mxu0 %v616
        %797 = vmatprep.subr.bf16.mxu0 0
        %798 = vmatpush1.bf16.msra.mxu0 %v617
        %799 = vmatprep.subr.bf16.mxu0 0
        %800 = vmatpush1.bf16.msra.mxu0 %v618
        %801 = vmatprep.subr.bf16.mxu0 0
        %802 = vmatpush1.bf16.msra.mxu0 %v619
        %803 = vmatprep.subr.bf16.mxu0 0
        %804 = vmatpush1.bf16.msra.mxu0 %v620
        %805 = vmatprep.subr.bf16.mxu0 0
        %806 = vmatpush1.bf16.msra.mxu0 %v621
        %807 = vmatprep.subr.bf16.mxu0 0
        %808 = vmatpush1.bf16.msra.mxu0 %v622
        %809 = vmatprep.subr.bf16.mxu0 0
        %810 = vmatpush1.bf16.msra.mxu0 %v623
        %811 = vmatprep.subr.bf16.mxu0 0
        %812 = vmatpush1.bf16.msra.mxu0 %v624
        %813 = vmatprep.subr.bf16.mxu0 0
        %814 = vmatpush1.bf16.msra.mxu0 %v625
        %815 = vmatprep.subr.bf16.mxu0 0
        %816 = vmatpush1.bf16.msra.mxu0 %v626
        %817 = vmatprep.subr.bf16.mxu0 0
        %818 = vmatpush1.bf16.msra.mxu0 %v627
        %819 = vmatprep.subr.bf16.mxu0 0
        %820 = vmatpush1.bf16.msra.mxu0 %v628
        %821 = vmatprep.mubr.bf16.mxu0 %v726
        %822 = vmatmul.mubr.bf16.gmra.mrb[0].mxu0 %v725
        %v823 = vpop.f32.mrb[0].mxu0
        %v824 = vadd.f32 0.0, %v823
        %v825 = vpop.f32.mrb[0].mxu0
        %v826 = vpop.f32.mrb[0].mxu0
        %v827 = vadd.f32 0.0, %v826
        %v828 = vpop.f32.mrb[0].mxu0
        %829 = vmatprep.mubr.bf16.mxu0 %v728
        %830 = vmatmul.mubr.bf16.gmra.mrb[0].mxu0 %v727
        %v831 = vpop.f32.mrb[0].mxu0
        %v832 = vadd.f32 0.0, %v831
        %v833 = vpop.f32.mrb[0].mxu0
        %v834 = vpop.f32.mrb[0].mxu0
        %v835 = vadd.f32 0.0, %v834
        %v836 = vpop.f32.mrb[0].mxu0
        %837 = vmatprep.mubr.bf16.mxu0 %v730
        %838 = vmatmul.mubr.bf16.gmra.mrb[0].mxu0 %v729
        %v839 = vpop.f32.mrb[0].mxu0
        %v840 = vadd.f32 0.0, %v839
        %v841 = vpop.f32.mrb[0].mxu0
        %v842 = vpop.f32.mrb[0].mxu0
        %v843 = vadd.f32 0.0, %v842
        %v844 = vpop.f32.mrb[0].mxu0
        %845 = vmatprep.mubr.bf16.mxu0 %v732
        %846 = vmatmul.mubr.bf16.gmra.mrb[0].mxu0 %v731
        %v847 = vpop.f32.mrb[0].mxu0
        %v848 = vadd.f32 0.0, %v847
        %v849 = vpop.f32.mrb[0].mxu0
        %v850 = vpop.f32.mrb[0].mxu0
        %v851 = vadd.f32 0.0, %v850
        %v852 = vpop.f32.mrb[0].mxu0
        %853 = vmatprep.mubr.bf16.mxu0 %v734
        %854 = vmatmul.mubr.bf16.gmra.mrb[0].mxu0 %v733
        %v855 = vpop.f32.mrb[0].mxu0
        %v856 = vadd.f32 0.0, %v855
        %v857 = vpop.f32.mrb[0].mxu0
        %v858 = vpop.f32.mrb[0].mxu0
        %v859 = vadd.f32 0.0, %v858
        %v860 = vpop.f32.mrb[0].mxu0
        %861 = vmatprep.mubr.bf16.mxu0 %v736
        %862 = vmatmul.mubr.bf16.gmra.mrb[0].mxu0 %v735
        %v863 = vpop.f32.mrb[0].mxu0
        %v864 = vadd.f32 0.0, %v863
        %v865 = vpop.f32.mrb[0].mxu0
        %v866 = vpop.f32.mrb[0].mxu0
        %v867 = vadd.f32 0.0, %v866
        %v868 = vpop.f32.mrb[0].mxu0
        %869 = vmatprep.mubr.bf16.mxu0 %v738
        %870 = vmatmul.mubr.bf16.gmra.mrb[0].mxu0 %v737
        %v871 = vpop.f32.mrb[0].mxu0
        %v872 = vadd.f32 0.0, %v871
        %v873 = vpop.f32.mrb[0].mxu0
        %v874 = vpop.f32.mrb[0].mxu0
        %v875 = vadd.f32 0.0, %v874
        %v876 = vpop.f32.mrb[0].mxu0
        %877 = vmatprep.mubr.bf16.mxu0 %v740
        %878 = vmatmul.mubr.bf16.gmra.mrb[0].mxu0 %v739
        %v879 = vpop.f32.mrb[0].mxu0
        %v880 = vadd.f32 0.0, %v879
        %v881 = vpop.f32.mrb[0].mxu0
        %v882 = vpop.f32.mrb[0].mxu0
        %v883 = vadd.f32 0.0, %v882
        %v884 = vpop.f32.mrb[0].mxu0
        %885 = vmatprep.mubr.bf16.mxu0 %v742
        %886 = vmatmul.mubr.bf16.gmra.mrb[0].mxu0 %v741
        %v887 = vpop.f32.mrb[0].mxu0
        %v888 = vadd.f32 0.0, %v887
        %v889 = vpop.f32.mrb[0].mxu0
        %v890 = vpop.f32.mrb[0].mxu0
        %v891 = vadd.f32 0.0, %v890
        %v892 = vpop.f32.mrb[0].mxu0
        %893 = vmatprep.mubr.bf16.mxu0 %v744
        %894 = vmatmul.mubr.bf16.gmra.mrb[0].mxu0 %v743
        %v895 = vpop.f32.mrb[0].mxu0
        %v896 = vadd.f32 0.0, %v895
        %v897 = vpop.f32.mrb[0].mxu0
        %v898 = vpop.f32.mrb[0].mxu0
        %v899 = vadd.f32 0.0, %v898
        %v900 = vpop.f32.mrb[0].mxu0
        %901 = vmatprep.mubr.bf16.mxu0 %v746
        %902 = vmatmul.mubr.bf16.gmra.mrb[0].mxu0 %v745
        %v903 = vpop.f32.mrb[0].mxu0
        %v904 = vadd.f32 0.0, %v903
        %v905 = vpop.f32.mrb[0].mxu0
        %v906 = vpop.f32.mrb[0].mxu0
        %v907 = vadd.f32 0.0, %v906
        %v908 = vpop.f32.mrb[0].mxu0
        %909 = vmatprep.mubr.bf16.mxu0 %v748
        %910 = vmatmul.mubr.bf16.gmra.mrb[0].mxu0 %v747
        %v911 = vpop.f32.mrb[0].mxu0
        %v912 = vadd.f32 0.0, %v911
        %v913 = vpop.f32.mrb[0].mxu0
        %v914 = vpop.f32.mrb[0].mxu0
        %v915 = vadd.f32 0.0, %v914
        %v916 = vpop.f32.mrb[0].mxu0
        %917 = vmatprep.mubr.bf16.mxu0 %v750
        %918 = vmatmul.mubr.bf16.gmra.mrb[0].mxu0 %v749
        %v919 = vpop.f32.mrb[0].mxu0
        %v920 = vadd.f32 0.0, %v919
        %v921 = vpop.f32.mrb[0].mxu0
        %v922 = vpop.f32.mrb[0].mxu0
        %v923 = vadd.f32 0.0, %v922
        %v924 = vpop.f32.mrb[0].mxu0
        %925 = vmatprep.mubr.bf16.mxu0 %v752
        %926 = vmatmul.mubr.bf16.gmra.mrb[0].mxu0 %v751
        %v927 = vpop.f32.mrb[0].mxu0
        %v928 = vadd.f32 0.0, %v927
        %v929 = vpop.f32.mrb[0].mxu0
        %v930 = vpop.f32.mrb[0].mxu0
        %v931 = vadd.f32 0.0, %v930
        %v932 = vpop.f32.mrb[0].mxu0
        %933 = vmatprep.mubr.bf16.mxu0 %v754
        %934 = vmatmul.mubr.bf16.gmra.mrb[0].mxu0 %v753
        %v935 = vpop.f32.mrb[0].mxu0
        %v936 = vadd.f32 0.0, %v935
        %v937 = vpop.f32.mrb[0].mxu0
        %v938 = vpop.f32.mrb[0].mxu0
        %v939 = vadd.f32 0.0, %v938
        %v940 = vpop.f32.mrb[0].mxu0
        %941 = vmatprep.mubr.bf16.mxu0 %v756
        %942 = vmatmul.mubr.bf16.gmra.mrb[0].mxu0 %v755
        %v943 = vpop.f32.mrb[0].mxu0
        %v944 = vadd.f32 0.0, %v943
        %v945 = vpop.f32.mrb[0].mxu0
        %v946 = vpop.f32.mrb[0].mxu0
        %v947 = vadd.f32 0.0, %v946
        %v948 = vpop.f32.mrb[0].mxu0
        %949 = vdwg.mxu0
        %v950 = vpack.c.bf16 %v827, %v824
        %v951 = vpack.c.bf16 %v835, %v832
        %v952 = vpack.c.bf16 %v843, %v840
        %v953 = vpack.c.bf16 %v851, %v848
        %v954 = vpack.c.bf16 %v859, %v856
        %v955 = vpack.c.bf16 %v867, %v864
        %v956 = vpack.c.bf16 %v875, %v872
        %v957 = vpack.c.bf16 %v883, %v880
        %v958 = vpack.c.bf16 %v891, %v888
        %v959 = vpack.c.bf16 %v899, %v896
        %v960 = vpack.c.bf16 %v907, %v904
        %v961 = vpack.c.bf16 %v915, %v912
        %v962 = vpack.c.bf16 %v923, %v920
        %v963 = vpack.c.bf16 %v931, %v928
        %v964 = vpack.c.bf16 %v939, %v936
        %v965 = vpack.c.bf16 %v947, %v944
        %v966 = vld [vmem:[%s366] sm:$0xf]
        %v967 = vld [vmem:[%s366 + $0x4] sm:$0xf]
        %v968 = vld [vmem:[%s366 + $0x8] sm:$0xf]
        %v969 = vld [vmem:[%s366 + $0xc] sm:$0xf]
        %v970 = vld [vmem:[%s366 + $0x10] sm:$0xf]
        %v971 = vld [vmem:[%s366 + $0x14] sm:$0xf]
        %v972 = vld [vmem:[%s366 + $0x18] sm:$0xf]
        %v973 = vld [vmem:[%s366 + $0x1c] sm:$0xf]
        %v974 = vld [vmem:[%s366 + $0x20] sm:$0xf]
        %v975 = vld [vmem:[%s366 + $0x24] sm:$0xf]
        %v976 = vld [vmem:[%s366 + $0x28] sm:$0xf]
        %v977 = vld [vmem:[%s366 + $0x2c] sm:$0xf]
        %v978 = vld [vmem:[%s366 + $0x30] sm:$0xf]
        %v979 = vld [vmem:[%s366 + $0x34] sm:$0xf]
        %v980 = vld [vmem:[%s366 + $0x38] sm:$0xf]
        %v981 = vld [vmem:[%s366 + $0x3c] sm:$0xf]
        %v998 = vunpack.c.l.b16 %v966
        %v999 = vunpack.c.l.b16 %v967
        %v1000 = vunpack.c.l.b16 %v968
        %v1001 = vunpack.c.l.b16 %v969
        %v1002 = vunpack.c.l.b16 %v970
        %v1003 = vunpack.c.l.b16 %v971
        %v1004 = vunpack.c.l.b16 %v972
        %v1005 = vunpack.c.l.b16 %v973
        %v1006 = vunpack.c.l.b16 %v974
        %v1007 = vunpack.c.l.b16 %v975
        %v1008 = vunpack.c.l.b16 %v976
        %v1009 = vunpack.c.l.b16 %v977
        %v1010 = vunpack.c.l.b16 %v978
        %v1011 = vunpack.c.l.b16 %v979
        %v1012 = vunpack.c.l.b16 %v980
        %v1013 = vunpack.c.l.b16 %v981
        %v1014 = vpack.c.b16 %v999, %v998
        %v1015 = vpack.c.b16 %v1001, %v1000
        %v1016 = vpack.c.b16 %v1003, %v1002
        %v1017 = vpack.c.b16 %v1005, %v1004
        %v1018 = vpack.c.b16 %v1007, %v1006
        %v1019 = vpack.c.b16 %v1009, %v1008
        %v1020 = vpack.c.b16 %v1011, %v1010
        %v1021 = vpack.c.b16 %v1013, %v1012
        %1030 = vmatprep.subr.bf16.mxu0 0
        %1031 = vmatpush1.bf16.msra.mxu0 %v1014
        %1032 = vmatprep.subr.bf16.mxu0 0
        %1033 = vmatpush1.bf16.msra.mxu0 %v1015
        %1034 = vmatprep.subr.bf16.mxu0 0
        %1035 = vmatpush1.bf16.msra.mxu0 %v1016
        %1036 = vmatprep.subr.bf16.mxu0 0
        %1037 = vmatpush1.bf16.msra.mxu0 %v1017
        %1038 = vmatprep.subr.bf16.mxu0 0
        %1039 = vmatpush1.bf16.msra.mxu0 %v1018
        %1040 = vmatprep.subr.bf16.mxu0 0
        %1041 = vmatpush1.bf16.msra.mxu0 %v1019
        %1042 = vmatprep.subr.bf16.mxu0 0
        %1043 = vmatpush1.bf16.msra.mxu0 %v1020
        %1044 = vmatprep.subr.bf16.mxu0 0
        %1045 = vmatpush1.bf16.msra.mxu0 %v1021
        %1046 = vmatprep.subr.bf16.mxu0 0
        %1047 = vmatpush1.bf16.msra.mxu0 0
        %1048 = vmatprep.subr.bf16.mxu0 0
        %1049 = vmatpush1.bf16.msra.mxu0 0
        %1050 = vmatprep.subr.bf16.mxu0 0
        %1051 = vmatpush1.bf16.msra.mxu0 0
        %1052 = vmatprep.subr.bf16.mxu0 0
        %1053 = vmatpush1.bf16.msra.mxu0 0
        %1054 = vmatprep.subr.bf16.mxu0 0
        %1055 = vmatpush1.bf16.msra.mxu0 0
        %1056 = vmatprep.subr.bf16.mxu0 0
        %1057 = vmatpush1.bf16.msra.mxu0 0
        %1058 = vmatprep.subr.bf16.mxu0 0
        %1059 = vmatpush1.bf16.msra.mxu0 0
        %1060 = vmatprep.subr.bf16.mxu0 0
        %1061 = vmatpush1.bf16.msra.mxu0 0
        %1062 = vmatprep.mubr.bf16.mxu0 0
        %1063 = vmatmul.mubr.bf16.gmra.mrb[0].mxu0 %v950
        %v1064 = vpop.f32.mrb[0].mxu0
        %v1065 = vadd.f32 0.0, %v1064
        %v1066 = vpop.f32.mrb[0].mxu0
        %v1067 = vpop.f32.mrb[0].mxu0
        %v1068 = vadd.f32 0.0, %v1067
        %v1069 = vpop.f32.mrb[0].mxu0
        %1070 = vmatprep.mubr.bf16.mxu0 0
        %1071 = vmatmul.mubr.bf16.gmra.mrb[0].mxu0 %v951
        %v1072 = vpop.f32.mrb[0].mxu0
        %v1073 = vadd.f32 0.0, %v1072
        %v1074 = vpop.f32.mrb[0].mxu0
        %v1075 = vpop.f32.mrb[0].mxu0
        %v1076 = vadd.f32 0.0, %v1075
        %v1077 = vpop.f32.mrb[0].mxu0
        %1078 = vmatprep.mubr.bf16.mxu0 0
        %1079 = vmatmul.mubr.bf16.gmra.mrb[0].mxu0 %v952
        %v1080 = vpop.f32.mrb[0].mxu0
        %v1081 = vadd.f32 0.0, %v1080
        %v1082 = vpop.f32.mrb[0].mxu0
        %v1083 = vpop.f32.mrb[0].mxu0
        %v1084 = vadd.f32 0.0, %v1083
        %v1085 = vpop.f32.mrb[0].mxu0
        %1086 = vmatprep.mubr.bf16.mxu0 0
        %1087 = vmatmul.mubr.bf16.gmra.mrb[0].mxu0 %v953
        %v1088 = vpop.f32.mrb[0].mxu0
        %v1089 = vadd.f32 0.0, %v1088
        %v1090 = vpop.f32.mrb[0].mxu0
        %v1091 = vpop.f32.mrb[0].mxu0
        %v1092 = vadd.f32 0.0, %v1091
        %v1093 = vpop.f32.mrb[0].mxu0
        %1094 = vmatprep.mubr.bf16.mxu0 0
        %1095 = vmatmul.mubr.bf16.gmra.mrb[0].mxu0 %v954
        %v1096 = vpop.f32.mrb[0].mxu0
        %v1097 = vadd.f32 0.0, %v1096
        %v1098 = vpop.f32.mrb[0].mxu0
        %v1099 = vpop.f32.mrb[0].mxu0
        %v1100 = vadd.f32 0.0, %v1099
        %v1101 = vpop.f32.mrb[0].mxu0
        %1102 = vmatprep.mubr.bf16.mxu0 0
        %1103 = vmatmul.mubr.bf16.gmra.mrb[0].mxu0 %v955
        %v1104 = vpop.f32.mrb[0].mxu0
        %v1105 = vadd.f32 0.0, %v1104
        %v1106 = vpop.f32.mrb[0].mxu0
        %v1107 = vpop.f32.mrb[0].mxu0
        %v1108 = vadd.f32 0.0, %v1107
        %v1109 = vpop.f32.mrb[0].mxu0
        %1110 = vmatprep.mubr.bf16.mxu0 0
        %1111 = vmatmul.mubr.bf16.gmra.mrb[0].mxu0 %v956
        %v1112 = vpop.f32.mrb[0].mxu0
        %v1113 = vadd.f32 0.0, %v1112
        %v1114 = vpop.f32.mrb[0].mxu0
        %v1115 = vpop.f32.mrb[0].mxu0
        %v1116 = vadd.f32 0.0, %v1115
        %v1117 = vpop.f32.mrb[0].mxu0
        %1118 = vmatprep.mubr.bf16.mxu0 0
        %1119 = vmatmul.mubr.bf16.gmra.mrb[0].mxu0 %v957
        %v1120 = vpop.f32.mrb[0].mxu0
        %v1121 = vadd.f32 0.0, %v1120
        %v1122 = vpop.f32.mrb[0].mxu0
        %v1123 = vpop.f32.mrb[0].mxu0
        %v1124 = vadd.f32 0.0, %v1123
        %v1125 = vpop.f32.mrb[0].mxu0
        %1126 = vmatprep.mubr.bf16.mxu0 0
        %1127 = vmatmul.mubr.bf16.gmra.mrb[0].mxu0 %v958
        %v1128 = vpop.f32.mrb[0].mxu0
        %v1129 = vadd.f32 0.0, %v1128
        %v1130 = vpop.f32.mrb[0].mxu0
        %v1131 = vpop.f32.mrb[0].mxu0
        %v1132 = vadd.f32 0.0, %v1131
        %v1133 = vpop.f32.mrb[0].mxu0
        %1134 = vmatprep.mubr.bf16.mxu0 0
        %1135 = vmatmul.mubr.bf16.gmra.mrb[0].mxu0 %v959
        %v1136 = vpop.f32.mrb[0].mxu0
        %v1137 = vadd.f32 0.0, %v1136
        %v1138 = vpop.f32.mrb[0].mxu0
        %v1139 = vpop.f32.mrb[0].mxu0
        %v1140 = vadd.f32 0.0, %v1139
        %v1141 = vpop.f32.mrb[0].mxu0
        %1142 = vmatprep.mubr.bf16.mxu0 0
        %1143 = vmatmul.mubr.bf16.gmra.mrb[0].mxu0 %v960
        %v1144 = vpop.f32.mrb[0].mxu0
        %v1145 = vadd.f32 0.0, %v1144
        %v1146 = vpop.f32.mrb[0].mxu0
        %v1147 = vpop.f32.mrb[0].mxu0
        %v1148 = vadd.f32 0.0, %v1147
        %v1149 = vpop.f32.mrb[0].mxu0
        %1150 = vmatprep.mubr.bf16.mxu0 0
        %1151 = vmatmul.mubr.bf16.gmra.mrb[0].mxu0 %v961
        %v1152 = vpop.f32.mrb[0].mxu0
        %v1153 = vadd.f32 0.0, %v1152
        %v1154 = vpop.f32.mrb[0].mxu0
        %v1155 = vpop.f32.mrb[0].mxu0
        %v1156 = vadd.f32 0.0, %v1155
        %v1157 = vpop.f32.mrb[0].mxu0
        %1158 = vmatprep.mubr.bf16.mxu0 0
        %1159 = vmatmul.mubr.bf16.gmra.mrb[0].mxu0 %v962
        %v1160 = vpop.f32.mrb[0].mxu0
        %v1161 = vadd.f32 0.0, %v1160
        %v1162 = vpop.f32.mrb[0].mxu0
        %v1163 = vpop.f32.mrb[0].mxu0
        %v1164 = vadd.f32 0.0, %v1163
        %v1165 = vpop.f32.mrb[0].mxu0
        %1166 = vmatprep.mubr.bf16.mxu0 0
        %1167 = vmatmul.mubr.bf16.gmra.mrb[0].mxu0 %v963
        %v1168 = vpop.f32.mrb[0].mxu0
        %v1169 = vadd.f32 0.0, %v1168
        %v1170 = vpop.f32.mrb[0].mxu0
        %v1171 = vpop.f32.mrb[0].mxu0
        %v1172 = vadd.f32 0.0, %v1171
        %v1173 = vpop.f32.mrb[0].mxu0
        %1174 = vmatprep.mubr.bf16.mxu0 0
        %1175 = vmatmul.mubr.bf16.gmra.mrb[0].mxu0 %v964
        %v1176 = vpop.f32.mrb[0].mxu0
        %v1177 = vadd.f32 0.0, %v1176
        %v1178 = vpop.f32.mrb[0].mxu0
        %v1179 = vpop.f32.mrb[0].mxu0
        %v1180 = vadd.f32 0.0, %v1179
        %v1181 = vpop.f32.mrb[0].mxu0
        %1182 = vmatprep.mubr.bf16.mxu0 0
        %1183 = vmatmul.mubr.bf16.gmra.mrb[0].mxu0 %v965
        %v1184 = vpop.f32.mrb[0].mxu0
        %v1185 = vadd.f32 0.0, %v1184
        %v1186 = vpop.f32.mrb[0].mxu0
        %v1187 = vpop.f32.mrb[0].mxu0
        %v1188 = vadd.f32 0.0, %v1187
        %v1189 = vpop.f32.mrb[0].mxu0
        %1190 = vdwg.mxu0
        %v1191 = vld [vmem:[%s422] sm:$0x1]
        %v1192 = vld [vmem:[%s425] sm:$0x1]
        %v1193 = vadd.f32 %v1065, %v1068
        %v1194 = vadd.f32 %v1193, %v1073
        %v1195 = vadd.f32 %v1194, %v1076
        %v1196 = vadd.f32 %v1195, %v1081
        %v1197 = vadd.f32 %v1196, %v1084
        %v1198 = vadd.f32 %v1197, %v1089
        %v1199 = vadd.f32 %v1198, %v1092
        %v1200 = vadd.f32 %v1199, %v1097
        %v1201 = vadd.f32 %v1200, %v1100
        %v1202 = vadd.f32 %v1201, %v1105
        %v1203 = vadd.f32 %v1202, %v1108
        %v1204 = vadd.f32 %v1203, %v1113
        %v1205 = vadd.f32 %v1204, %v1116
        %v1206 = vadd.f32 %v1205, %v1121
        %v1207 = vadd.f32 %v1206, %v1124
        %v1208 = vadd.f32 %v1207, %v1129
        %v1209 = vadd.f32 %v1208, %v1132
        %v1210 = vadd.f32 %v1209, %v1137
        %v1211 = vadd.f32 %v1210, %v1140
        %v1212 = vadd.f32 %v1211, %v1145
        %v1213 = vadd.f32 %v1212, %v1148
        %v1214 = vadd.f32 %v1213, %v1153
        %v1215 = vadd.f32 %v1214, %v1156
        %v1216 = vadd.f32 %v1215, %v1161
        %v1217 = vadd.f32 %v1216, %v1164
        %v1218 = vadd.f32 %v1217, %v1169
        %v1219 = vadd.f32 %v1218, %v1172
        %v1220 = vadd.f32 %v1219, %v1177
        %v1221 = vadd.f32 %v1220, %v1180
        %v1222 = vadd.f32 %v1221, %v1185
        %v1223 = vadd.f32 %v1222, %v1188
        %v1224 = vrot.slane %v1223, 4
        %v1225 = vadd.f32 %v1223, %v1224
        %v1226 = vrot.slane %v1225, 2
        %v1227 = vadd.f32 %v1225, %v1226
        %v1228 = vrot.slane %v1227, 1
        %v1229 = vadd.f32 %v1227, %v1228
        %v1230 = vmul.f32 %v1229, 0.00390625
        %v1231 = vsub.f32 %v1065, %v1230
        %v1232 = vsub.f32 %v1068, %v1230
        %v1233 = vsub.f32 %v1073, %v1230
        %v1234 = vsub.f32 %v1076, %v1230
        %v1235 = vsub.f32 %v1081, %v1230
        %v1236 = vsub.f32 %v1084, %v1230
        %v1237 = vsub.f32 %v1089, %v1230
        %v1238 = vsub.f32 %v1092, %v1230
        %v1239 = vsub.f32 %v1097, %v1230
        %v1240 = vsub.f32 %v1100, %v1230
        %v1241 = vsub.f32 %v1105, %v1230
        %v1242 = vsub.f32 %v1108, %v1230
        %v1243 = vsub.f32 %v1113, %v1230
        %v1244 = vsub.f32 %v1116, %v1230
        %v1245 = vsub.f32 %v1121, %v1230
        %v1246 = vsub.f32 %v1124, %v1230
        %v1247 = vsub.f32 %v1129, %v1230
        %v1248 = vsub.f32 %v1132, %v1230
        %v1249 = vsub.f32 %v1137, %v1230
        %v1250 = vsub.f32 %v1140, %v1230
        %v1251 = vsub.f32 %v1145, %v1230
        %v1252 = vsub.f32 %v1148, %v1230
        %v1253 = vsub.f32 %v1153, %v1230
        %v1254 = vsub.f32 %v1156, %v1230
        %v1255 = vsub.f32 %v1161, %v1230
        %v1256 = vsub.f32 %v1164, %v1230
        %v1257 = vsub.f32 %v1169, %v1230
        %v1258 = vsub.f32 %v1172, %v1230
        %v1259 = vsub.f32 %v1177, %v1230
        %v1260 = vsub.f32 %v1180, %v1230
        %v1261 = vsub.f32 %v1185, %v1230
        %v1262 = vsub.f32 %v1188, %v1230
        %v1263 = vmul.f32 %v1231, %v1231
        %v1264 = vmul.f32 %v1232, %v1232
        %v1265 = vmul.f32 %v1233, %v1233
        %v1266 = vmul.f32 %v1234, %v1234
        %v1267 = vmul.f32 %v1235, %v1235
        %v1268 = vmul.f32 %v1236, %v1236
        %v1269 = vmul.f32 %v1237, %v1237
        %v1270 = vmul.f32 %v1238, %v1238
        %v1271 = vmul.f32 %v1239, %v1239
        %v1272 = vmul.f32 %v1240, %v1240
        %v1273 = vmul.f32 %v1241, %v1241
        %v1274 = vmul.f32 %v1242, %v1242
        %v1275 = vmul.f32 %v1243, %v1243
        %v1276 = vmul.f32 %v1244, %v1244
        %v1277 = vmul.f32 %v1245, %v1245
        %v1278 = vmul.f32 %v1246, %v1246
        %v1279 = vmul.f32 %v1247, %v1247
        %v1280 = vmul.f32 %v1248, %v1248
        %v1281 = vmul.f32 %v1249, %v1249
        %v1282 = vmul.f32 %v1250, %v1250
        %v1283 = vmul.f32 %v1251, %v1251
        %v1284 = vmul.f32 %v1252, %v1252
        %v1285 = vmul.f32 %v1253, %v1253
        %v1286 = vmul.f32 %v1254, %v1254
        %v1287 = vmul.f32 %v1255, %v1255
        %v1288 = vmul.f32 %v1256, %v1256
        %v1289 = vmul.f32 %v1257, %v1257
        %v1290 = vmul.f32 %v1258, %v1258
        %v1291 = vmul.f32 %v1259, %v1259
        %v1292 = vmul.f32 %v1260, %v1260
        %v1293 = vmul.f32 %v1261, %v1261
        %v1294 = vmul.f32 %v1262, %v1262
        %v1295 = vadd.f32 %v1263, %v1264
        %v1296 = vadd.f32 %v1295, %v1265
        %v1297 = vadd.f32 %v1296, %v1266
        %v1298 = vadd.f32 %v1297, %v1267
        %v1299 = vadd.f32 %v1298, %v1268
        %v1300 = vadd.f32 %v1299, %v1269
        %v1301 = vadd.f32 %v1300, %v1270
        %v1302 = vadd.f32 %v1301, %v1271
        %v1303 = vadd.f32 %v1302, %v1272
        %v1304 = vadd.f32 %v1303, %v1273
        %v1305 = vadd.f32 %v1304, %v1274
        %v1306 = vadd.f32 %v1305, %v1275
        %v1307 = vadd.f32 %v1306, %v1276
        %v1308 = vadd.f32 %v1307, %v1277
        %v1309 = vadd.f32 %v1308, %v1278
        %v1310 = vadd.f32 %v1309, %v1279
        %v1311 = vadd.f32 %v1310, %v1280
        %v1312 = vadd.f32 %v1311, %v1281
        %v1313 = vadd.f32 %v1312, %v1282
        %v1314 = vadd.f32 %v1313, %v1283
        %v1315 = vadd.f32 %v1314, %v1284
        %v1316 = vadd.f32 %v1315, %v1285
        %v1317 = vadd.f32 %v1316, %v1286
        %v1318 = vadd.f32 %v1317, %v1287
        %v1319 = vadd.f32 %v1318, %v1288
        %v1320 = vadd.f32 %v1319, %v1289
        %v1321 = vadd.f32 %v1320, %v1290
        %v1322 = vadd.f32 %v1321, %v1291
        %v1323 = vadd.f32 %v1322, %v1292
        %v1324 = vadd.f32 %v1323, %v1293
        %v1325 = vadd.f32 %v1324, %v1294
        %v1326 = vrot.slane %v1325, 4
        %v1327 = vadd.f32 %v1325, %v1326
        %v1328 = vrot.slane %v1327, 2
        %v1329 = vadd.f32 %v1327, %v1328
        %v1330 = vrot.slane %v1329, 1
        %v1331 = vadd.f32 %v1329, %v1330
        %v1332 = vmul.f32 %v1331, 0.00390625
        %v1333 = vadd.f32 %v1332, 1e-05
        %v1334 = vrsqrt.pop %v1333
        %v1335 = vmul.f32 %v1191, %v1334
        %v1337 = vlaneseq
        %v1338 = vshrl.u32 %v1337, 7
        %v1339 = vsub.s32 0, %v1338
        %v1340 = vrot.slane %v1335, %v1339
        %v1342 = vmul.f32 %v1231, %v1340
        %v1343 = vmul.f32 %v1232, %v1340
        %v1344 = vmul.f32 %v1233, %v1340
        %v1345 = vmul.f32 %v1234, %v1340
        %v1346 = vmul.f32 %v1235, %v1340
        %v1347 = vmul.f32 %v1236, %v1340
        %v1348 = vmul.f32 %v1237, %v1340
        %v1349 = vmul.f32 %v1238, %v1340
        %v1350 = vmul.f32 %v1239, %v1340
        %v1351 = vmul.f32 %v1240, %v1340
        %v1352 = vmul.f32 %v1241, %v1340
        %v1353 = vmul.f32 %v1242, %v1340
        %v1354 = vmul.f32 %v1243, %v1340
        %v1355 = vmul.f32 %v1244, %v1340
        %v1356 = vmul.f32 %v1245, %v1340
        %v1357 = vmul.f32 %v1246, %v1340
        %v1358 = vmul.f32 %v1247, %v1340
        %v1359 = vmul.f32 %v1248, %v1340
        %v1360 = vmul.f32 %v1249, %v1340
        %v1361 = vmul.f32 %v1250, %v1340
        %v1362 = vmul.f32 %v1251, %v1340
        %v1363 = vmul.f32 %v1252, %v1340
        %v1364 = vmul.f32 %v1253, %v1340
        %v1365 = vmul.f32 %v1254, %v1340
        %v1366 = vmul.f32 %v1255, %v1340
        %v1367 = vmul.f32 %v1256, %v1340
        %v1368 = vmul.f32 %v1257, %v1340
        %v1369 = vmul.f32 %v1258, %v1340
        %v1370 = vmul.f32 %v1259, %v1340
        %v1371 = vmul.f32 %v1260, %v1340
        %v1372 = vmul.f32 %v1261, %v1340
        %v1373 = vmul.f32 %v1262, %v1340
        %v1375 = vlaneseq
        %v1376 = vshrl.u32 %v1375, 7
        %v1377 = vsub.s32 0, %v1376
        %v1378 = vrot.slane %v1192, %v1377
        %v1380 = vadd.f32 %v1342, %v1378
        %v1381 = vadd.f32 %v1343, %v1378
        %v1382 = vadd.f32 %v1344, %v1378
        %v1383 = vadd.f32 %v1345, %v1378
        %v1384 = vadd.f32 %v1346, %v1378
        %v1385 = vadd.f32 %v1347, %v1378
        %v1386 = vadd.f32 %v1348, %v1378
        %v1387 = vadd.f32 %v1349, %v1378
        %v1388 = vadd.f32 %v1350, %v1378
        %v1389 = vadd.f32 %v1351, %v1378
        %v1390 = vadd.f32 %v1352, %v1378
        %v1391 = vadd.f32 %v1353, %v1378
        %v1392 = vadd.f32 %v1354, %v1378
        %v1393 = vadd.f32 %v1355, %v1378
        %v1394 = vadd.f32 %v1356, %v1378
        %v1395 = vadd.f32 %v1357, %v1378
        %v1396 = vadd.f32 %v1358, %v1378
        %v1397 = vadd.f32 %v1359, %v1378
        %v1398 = vadd.f32 %v1360, %v1378
        %v1399 = vadd.f32 %v1361, %v1378
        %v1400 = vadd.f32 %v1362, %v1378
        %v1401 = vadd.f32 %v1363, %v1378
        %v1402 = vadd.f32 %v1364, %v1378
        %v1403 = vadd.f32 %v1365, %v1378
        %v1404 = vadd.f32 %v1366, %v1378
        %v1405 = vadd.f32 %v1367, %v1378
        %v1406 = vadd.f32 %v1368, %v1378
        %v1407 = vadd.f32 %v1369, %v1378
        %v1408 = vadd.f32 %v1370, %v1378
        %v1409 = vadd.f32 %v1371, %v1378
        %v1410 = vadd.f32 %v1372, %v1378
        %v1411 = vadd.f32 %v1373, %v1378
        %v1412 = vmax.f32 %v1380, 0.0
        %v1413 = vmax.f32 %v1381, 0.0
        %v1414 = vmax.f32 %v1382, 0.0
        %v1415 = vmax.f32 %v1383, 0.0
        %v1416 = vmax.f32 %v1384, 0.0
        %v1417 = vmax.f32 %v1385, 0.0
        %v1418 = vmax.f32 %v1386, 0.0
        %v1419 = vmax.f32 %v1387, 0.0
        %v1420 = vmax.f32 %v1388, 0.0
        %v1421 = vmax.f32 %v1389, 0.0
        %v1422 = vmax.f32 %v1390, 0.0
        %v1423 = vmax.f32 %v1391, 0.0
        %v1424 = vmax.f32 %v1392, 0.0
        %v1425 = vmax.f32 %v1393, 0.0
        %v1426 = vmax.f32 %v1394, 0.0
        %v1427 = vmax.f32 %v1395, 0.0
        %v1428 = vmax.f32 %v1396, 0.0
        %v1429 = vmax.f32 %v1397, 0.0
        %v1430 = vmax.f32 %v1398, 0.0
        %v1431 = vmax.f32 %v1399, 0.0
        %v1432 = vmax.f32 %v1400, 0.0
        %v1433 = vmax.f32 %v1401, 0.0
        %v1434 = vmax.f32 %v1402, 0.0
        %v1435 = vmax.f32 %v1403, 0.0
        %v1436 = vmax.f32 %v1404, 0.0
        %v1437 = vmax.f32 %v1405, 0.0
        %v1438 = vmax.f32 %v1406, 0.0
        %v1439 = vmax.f32 %v1407, 0.0
        %v1440 = vmax.f32 %v1408, 0.0
        %v1441 = vmax.f32 %v1409, 0.0
        %v1442 = vmax.f32 %v1410, 0.0
        %v1443 = vmax.f32 %v1411, 0.0
        %v1444 = vpack.c.bf16 %v1413, %v1412
        %v1445 = vpack.c.bf16 %v1415, %v1414
        %v1446 = vpack.c.bf16 %v1417, %v1416
        %v1447 = vpack.c.bf16 %v1419, %v1418
        %v1448 = vpack.c.bf16 %v1421, %v1420
        %v1449 = vpack.c.bf16 %v1423, %v1422
        %v1450 = vpack.c.bf16 %v1425, %v1424
        %v1451 = vpack.c.bf16 %v1427, %v1426
        %v1452 = vpack.c.bf16 %v1429, %v1428
        %v1453 = vpack.c.bf16 %v1431, %v1430
        %v1454 = vpack.c.bf16 %v1433, %v1432
        %v1455 = vpack.c.bf16 %v1435, %v1434
        %v1456 = vpack.c.bf16 %v1437, %v1436
        %v1457 = vpack.c.bf16 %v1439, %v1438
        %v1458 = vpack.c.bf16 %v1441, %v1440
        %v1459 = vpack.c.bf16 %v1443, %v1442
        %v1460 = vld [vmem:[%s375] sm:$0xf]
        %v1461 = vld [vmem:[%s375 + $0x4] sm:$0xf]
        %v1462 = vld [vmem:[%s375 + $0x8] sm:$0xf]
        %v1463 = vld [vmem:[%s375 + $0xc] sm:$0xf]
        %v1464 = vld [vmem:[%s375 + $0x10] sm:$0xf]
        %v1465 = vld [vmem:[%s375 + $0x14] sm:$0xf]
        %v1466 = vld [vmem:[%s375 + $0x18] sm:$0xf]
        %v1467 = vld [vmem:[%s375 + $0x1c] sm:$0xf]
        %v1468 = vld [vmem:[%s375 + $0x20] sm:$0xf]
        %v1469 = vld [vmem:[%s375 + $0x24] sm:$0xf]
        %v1470 = vld [vmem:[%s375 + $0x28] sm:$0xf]
        %v1471 = vld [vmem:[%s375 + $0x2c] sm:$0xf]
        %v1472 = vld [vmem:[%s375 + $0x30] sm:$0xf]
        %v1473 = vld [vmem:[%s375 + $0x34] sm:$0xf]
        %v1474 = vld [vmem:[%s375 + $0x38] sm:$0xf]
        %v1475 = vld [vmem:[%s375 + $0x3c] sm:$0xf]
        %v1492 = vunpack.c.l.b16 %v1460
        %v1493 = vunpack.c.l.b16 %v1461
        %v1494 = vunpack.c.l.b16 %v1462
        %v1495 = vunpack.c.l.b16 %v1463
        %v1496 = vunpack.c.l.b16 %v1464
        %v1497 = vunpack.c.l.b16 %v1465
        %v1498 = vunpack.c.l.b16 %v1466
        %v1499 = vunpack.c.l.b16 %v1467
        %v1500 = vunpack.c.l.b16 %v1468
        %v1501 = vunpack.c.l.b16 %v1469
        %v1502 = vunpack.c.l.b16 %v1470
        %v1503 = vunpack.c.l.b16 %v1471
        %v1504 = vunpack.c.l.b16 %v1472
        %v1505 = vunpack.c.l.b16 %v1473
        %v1506 = vunpack.c.l.b16 %v1474
        %v1507 = vunpack.c.l.b16 %v1475
        %v1508 = vpack.c.b16 %v1493, %v1492
        %v1509 = vpack.c.b16 %v1495, %v1494
        %v1510 = vpack.c.b16 %v1497, %v1496
        %v1511 = vpack.c.b16 %v1499, %v1498
        %v1512 = vpack.c.b16 %v1501, %v1500
        %v1513 = vpack.c.b16 %v1503, %v1502
        %v1514 = vpack.c.b16 %v1505, %v1504
        %v1515 = vpack.c.b16 %v1507, %v1506
        %1524 = vmatprep.subr.bf16.mxu0 0
        %1525 = vmatpush1.bf16.msra.mxu0 %v1508
        %1526 = vmatprep.subr.bf16.mxu0 0
        %1527 = vmatpush1.bf16.msra.mxu0 %v1509
        %1528 = vmatprep.subr.bf16.mxu0 0
        %1529 = vmatpush1.bf16.msra.mxu0 %v1510
        %1530 = vmatprep.subr.bf16.mxu0 0
        %1531 = vmatpush1.bf16.msra.mxu0 %v1511
        %1532 = vmatprep.subr.bf16.mxu0 0
        %1533 = vmatpush1.bf16.msra.mxu0 %v1512
        %1534 = vmatprep.subr.bf16.mxu0 0
        %1535 = vmatpush1.bf16.msra.mxu0 %v1513
        %1536 = vmatprep.subr.bf16.mxu0 0
        %1537 = vmatpush1.bf16.msra.mxu0 %v1514
        %1538 = vmatprep.subr.bf16.mxu0 0
        %1539 = vmatpush1.bf16.msra.mxu0 %v1515
        %1540 = vmatprep.subr.bf16.mxu0 0
        %1541 = vmatpush1.bf16.msra.mxu0 0
        %1542 = vmatprep.subr.bf16.mxu0 0
        %1543 = vmatpush1.bf16.msra.mxu0 0
        %1544 = vmatprep.subr.bf16.mxu0 0
        %1545 = vmatpush1.bf16.msra.mxu0 0
        %1546 = vmatprep.subr.bf16.mxu0 0
        %1547 = vmatpush1.bf16.msra.mxu0 0
        %1548 = vmatprep.subr.bf16.mxu0 0
        %1549 = vmatpush1.bf16.msra.mxu0 0
        %1550 = vmatprep.subr.bf16.mxu0 0
        %1551 = vmatpush1.bf16.msra.mxu0 0
        %1552 = vmatprep.subr.bf16.mxu0 0
        %1553 = vmatpush1.bf16.msra.mxu0 0
        %1554 = vmatprep.subr.bf16.mxu0 0
        %1555 = vmatpush1.bf16.msra.mxu0 0
        %1556 = vmatprep.mubr.bf16.mxu0 0
        %1557 = vmatmul.mubr.bf16.gmra.mrb[0].mxu0 %v1444
        %v1558 = vpop.f32.mrb[0].mxu0
        %v1559 = vadd.f32 0.0, %v1558
        %v1560 = vpop.f32.mrb[0].mxu0
        %v1561 = vpop.f32.mrb[0].mxu0
        %v1562 = vadd.f32 0.0, %v1561
        %v1563 = vpop.f32.mrb[0].mxu0
        %1564 = vmatprep.mubr.bf16.mxu0 0
        %1565 = vmatmul.mubr.bf16.gmra.mrb[0].mxu0 %v1445
        %v1566 = vpop.f32.mrb[0].mxu0
        %v1567 = vadd.f32 0.0, %v1566
        %v1568 = vpop.f32.mrb[0].mxu0
        %v1569 = vpop.f32.mrb[0].mxu0
        %v1570 = vadd.f32 0.0, %v1569
        %v1571 = vpop.f32.mrb[0].mxu0
        %1572 = vmatprep.mubr.bf16.mxu0 0
        %1573 = vmatmul.mubr.bf16.gmra.mrb[0].mxu0 %v1446
        %v1574 = vpop.f32.mrb[0].mxu0
        %v1575 = vadd.f32 0.0, %v1574
        %v1576 = vpop.f32.mrb[0].mxu0
        %v1577 = vpop.f32.mrb[0].mxu0
        %v1578 = vadd.f32 0.0, %v1577
        %v1579 = vpop.f32.mrb[0].mxu0
        %1580 = vmatprep.mubr.bf16.mxu0 0
        %1581 = vmatmul.mubr.bf16.gmra.mrb[0].mxu0 %v1447
        %v1582 = vpop.f32.mrb[0].mxu0
        %v1583 = vadd.f32 0.0, %v1582
        %v1584 = vpop.f32.mrb[0].mxu0
        %v1585 = vpop.f32.mrb[0].mxu0
        %v1586 = vadd.f32 0.0, %v1585
        %v1587 = vpop.f32.mrb[0].mxu0
        %1588 = vmatprep.mubr.bf16.mxu0 0
        %1589 = vmatmul.mubr.bf16.gmra.mrb[0].mxu0 %v1448
        %v1590 = vpop.f32.mrb[0].mxu0
        %v1591 = vadd.f32 0.0, %v1590
        %v1592 = vpop.f32.mrb[0].mxu0
        %v1593 = vpop.f32.mrb[0].mxu0
        %v1594 = vadd.f32 0.0, %v1593
        %v1595 = vpop.f32.mrb[0].mxu0
        %1596 = vmatprep.mubr.bf16.mxu0 0
        %1597 = vmatmul.mubr.bf16.gmra.mrb[0].mxu0 %v1449
        %v1598 = vpop.f32.mrb[0].mxu0
        %v1599 = vadd.f32 0.0, %v1598
        %v1600 = vpop.f32.mrb[0].mxu0
        %v1601 = vpop.f32.mrb[0].mxu0
        %v1602 = vadd.f32 0.0, %v1601
        %v1603 = vpop.f32.mrb[0].mxu0
        %1604 = vmatprep.mubr.bf16.mxu0 0
        %1605 = vmatmul.mubr.bf16.gmra.mrb[0].mxu0 %v1450
        %v1606 = vpop.f32.mrb[0].mxu0
        %v1607 = vadd.f32 0.0, %v1606
        %v1608 = vpop.f32.mrb[0].mxu0
        %v1609 = vpop.f32.mrb[0].mxu0
        %v1610 = vadd.f32 0.0, %v1609
        %v1611 = vpop.f32.mrb[0].mxu0
        %1612 = vmatprep.mubr.bf16.mxu0 0
        %1613 = vmatmul.mubr.bf16.gmra.mrb[0].mxu0 %v1451
        %v1614 = vpop.f32.mrb[0].mxu0
        %v1615 = vadd.f32 0.0, %v1614
        %v1616 = vpop.f32.mrb[0].mxu0
        %v1617 = vpop.f32.mrb[0].mxu0
        %v1618 = vadd.f32 0.0, %v1617
        %v1619 = vpop.f32.mrb[0].mxu0
        %1620 = vmatprep.mubr.bf16.mxu0 0
        %1621 = vmatmul.mubr.bf16.gmra.mrb[0].mxu0 %v1452
        %v1622 = vpop.f32.mrb[0].mxu0
        %v1623 = vadd.f32 0.0, %v1622
        %v1624 = vpop.f32.mrb[0].mxu0
        %v1625 = vpop.f32.mrb[0].mxu0
        %v1626 = vadd.f32 0.0, %v1625
        %v1627 = vpop.f32.mrb[0].mxu0
        %1628 = vmatprep.mubr.bf16.mxu0 0
        %1629 = vmatmul.mubr.bf16.gmra.mrb[0].mxu0 %v1453
        %v1630 = vpop.f32.mrb[0].mxu0
        %v1631 = vadd.f32 0.0, %v1630
        %v1632 = vpop.f32.mrb[0].mxu0
        %v1633 = vpop.f32.mrb[0].mxu0
        %v1634 = vadd.f32 0.0, %v1633
        %v1635 = vpop.f32.mrb[0].mxu0
        %1636 = vmatprep.mubr.bf16.mxu0 0
        %1637 = vmatmul.mubr.bf16.gmra.mrb[0].mxu0 %v1454
        %v1638 = vpop.f32.mrb[0].mxu0
        %v1639 = vadd.f32 0.0, %v1638
        %v1640 = vpop.f32.mrb[0].mxu0
        %v1641 = vpop.f32.mrb[0].mxu0
        %v1642 = vadd.f32 0.0, %v1641
        %v1643 = vpop.f32.mrb[0].mxu0
        %1644 = vmatprep.mubr.bf16.mxu0 0
        %1645 = vmatmul.mubr.bf16.gmra.mrb[0].mxu0 %v1455
        %v1646 = vpop.f32.mrb[0].mxu0
        %v1647 = vadd.f32 0.0, %v1646
        %v1648 = vpop.f32.mrb[0].mxu0
        %v1649 = vpop.f32.mrb[0].mxu0
        %v1650 = vadd.f32 0.0, %v1649
        %v1651 = vpop.f32.mrb[0].mxu0
        %1652 = vmatprep.mubr.bf16.mxu0 0
        %1653 = vmatmul.mubr.bf16.gmra.mrb[0].mxu0 %v1456
        %v1654 = vpop.f32.mrb[0].mxu0
        %v1655 = vadd.f32 0.0, %v1654
        %v1656 = vpop.f32.mrb[0].mxu0
        %v1657 = vpop.f32.mrb[0].mxu0
        %v1658 = vadd.f32 0.0, %v1657
        %v1659 = vpop.f32.mrb[0].mxu0
        %1660 = vmatprep.mubr.bf16.mxu0 0
        %1661 = vmatmul.mubr.bf16.gmra.mrb[0].mxu0 %v1457
        %v1662 = vpop.f32.mrb[0].mxu0
        %v1663 = vadd.f32 0.0, %v1662
        %v1664 = vpop.f32.mrb[0].mxu0
        %v1665 = vpop.f32.mrb[0].mxu0
        %v1666 = vadd.f32 0.0, %v1665
        %v1667 = vpop.f32.mrb[0].mxu0
        %1668 = vmatprep.mubr.bf16.mxu0 0
        %1669 = vmatmul.mubr.bf16.gmra.mrb[0].mxu0 %v1458
        %v1670 = vpop.f32.mrb[0].mxu0
        %v1671 = vadd.f32 0.0, %v1670
        %v1672 = vpop.f32.mrb[0].mxu0
        %v1673 = vpop.f32.mrb[0].mxu0
        %v1674 = vadd.f32 0.0, %v1673
        %v1675 = vpop.f32.mrb[0].mxu0
        %1676 = vmatprep.mubr.bf16.mxu0 0
        %1677 = vmatmul.mubr.bf16.gmra.mrb[0].mxu0 %v1459
        %v1678 = vpop.f32.mrb[0].mxu0
        %v1679 = vadd.f32 0.0, %v1678
        %v1680 = vpop.f32.mrb[0].mxu0
        %v1681 = vpop.f32.mrb[0].mxu0
        %v1682 = vadd.f32 0.0, %v1681
        %v1683 = vpop.f32.mrb[0].mxu0
        %1684 = vdwg.mxu0
        %v1685 = vld [vmem:[%s428] sm:$0x1]
        %v1686 = vld [vmem:[%s431] sm:$0x1]
        %v1687 = vadd.f32 %v1559, %v1562
        %v1688 = vadd.f32 %v1687, %v1567
        %v1689 = vadd.f32 %v1688, %v1570
        %v1690 = vadd.f32 %v1689, %v1575
        %v1691 = vadd.f32 %v1690, %v1578
        %v1692 = vadd.f32 %v1691, %v1583
        %v1693 = vadd.f32 %v1692, %v1586
        %v1694 = vadd.f32 %v1693, %v1591
        %v1695 = vadd.f32 %v1694, %v1594
        %v1696 = vadd.f32 %v1695, %v1599
        %v1697 = vadd.f32 %v1696, %v1602
        %v1698 = vadd.f32 %v1697, %v1607
        %v1699 = vadd.f32 %v1698, %v1610
        %v1700 = vadd.f32 %v1699, %v1615
        %v1701 = vadd.f32 %v1700, %v1618
        %v1702 = vadd.f32 %v1701, %v1623
        %v1703 = vadd.f32 %v1702, %v1626
        %v1704 = vadd.f32 %v1703, %v1631
        %v1705 = vadd.f32 %v1704, %v1634
        %v1706 = vadd.f32 %v1705, %v1639
        %v1707 = vadd.f32 %v1706, %v1642
        %v1708 = vadd.f32 %v1707, %v1647
        %v1709 = vadd.f32 %v1708, %v1650
        %v1710 = vadd.f32 %v1709, %v1655
        %v1711 = vadd.f32 %v1710, %v1658
        %v1712 = vadd.f32 %v1711, %v1663
        %v1713 = vadd.f32 %v1712, %v1666
        %v1714 = vadd.f32 %v1713, %v1671
        %v1715 = vadd.f32 %v1714, %v1674
        %v1716 = vadd.f32 %v1715, %v1679
        %v1717 = vadd.f32 %v1716, %v1682
        %v1718 = vrot.slane %v1717, 4
        %v1719 = vadd.f32 %v1717, %v1718
        %v1720 = vrot.slane %v1719, 2
        %v1721 = vadd.f32 %v1719, %v1720
        %v1722 = vrot.slane %v1721, 1
        %v1723 = vadd.f32 %v1721, %v1722
        %v1724 = vmul.f32 %v1723, 0.00390625
        %v1725 = vsub.f32 %v1559, %v1724
        %v1726 = vsub.f32 %v1562, %v1724
        %v1727 = vsub.f32 %v1567, %v1724
        %v1728 = vsub.f32 %v1570, %v1724
        %v1729 = vsub.f32 %v1575, %v1724
        %v1730 = vsub.f32 %v1578, %v1724
        %v1731 = vsub.f32 %v1583, %v1724
        %v1732 = vsub.f32 %v1586, %v1724
        %v1733 = vsub.f32 %v1591, %v1724
        %v1734 = vsub.f32 %v1594, %v1724
        %v1735 = vsub.f32 %v1599, %v1724
        %v1736 = vsub.f32 %v1602, %v1724
        %v1737 = vsub.f32 %v1607, %v1724
        %v1738 = vsub.f32 %v1610, %v1724
        %v1739 = vsub.f32 %v1615, %v1724
        %v1740 = vsub.f32 %v1618, %v1724
        %v1741 = vsub.f32 %v1623, %v1724
        %v1742 = vsub.f32 %v1626, %v1724
        %v1743 = vsub.f32 %v1631, %v1724
        %v1744 = vsub.f32 %v1634, %v1724
        %v1745 = vsub.f32 %v1639, %v1724
        %v1746 = vsub.f32 %v1642, %v1724
        %v1747 = vsub.f32 %v1647, %v1724
        %v1748 = vsub.f32 %v1650, %v1724
        %v1749 = vsub.f32 %v1655, %v1724
        %v1750 = vsub.f32 %v1658, %v1724
        %v1751 = vsub.f32 %v1663, %v1724
        %v1752 = vsub.f32 %v1666, %v1724
        %v1753 = vsub.f32 %v1671, %v1724
        %v1754 = vsub.f32 %v1674, %v1724
        %v1755 = vsub.f32 %v1679, %v1724
        %v1756 = vsub.f32 %v1682, %v1724
        %v1757 = vmul.f32 %v1725, %v1725
        %v1758 = vmul.f32 %v1726, %v1726
        %v1759 = vmul.f32 %v1727, %v1727
        %v1760 = vmul.f32 %v1728, %v1728
        %v1761 = vmul.f32 %v1729, %v1729
        %v1762 = vmul.f32 %v1730, %v1730
        %v1763 = vmul.f32 %v1731, %v1731
        %v1764 = vmul.f32 %v1732, %v1732
        %v1765 = vmul.f32 %v1733, %v1733
        %v1766 = vmul.f32 %v1734, %v1734
        %v1767 = vmul.f32 %v1735, %v1735
        %v1768 = vmul.f32 %v1736, %v1736
        %v1769 = vmul.f32 %v1737, %v1737
        %v1770 = vmul.f32 %v1738, %v1738
        %v1771 = vmul.f32 %v1739, %v1739
        %v1772 = vmul.f32 %v1740, %v1740
        %v1773 = vmul.f32 %v1741, %v1741
        %v1774 = vmul.f32 %v1742, %v1742
        %v1775 = vmul.f32 %v1743, %v1743
        %v1776 = vmul.f32 %v1744, %v1744
        %v1777 = vmul.f32 %v1745, %v1745
        %v1778 = vmul.f32 %v1746, %v1746
        %v1779 = vmul.f32 %v1747, %v1747
        %v1780 = vmul.f32 %v1748, %v1748
        %v1781 = vmul.f32 %v1749, %v1749
        %v1782 = vmul.f32 %v1750, %v1750
        %v1783 = vmul.f32 %v1751, %v1751
        %v1784 = vmul.f32 %v1752, %v1752
        %v1785 = vmul.f32 %v1753, %v1753
        %v1786 = vmul.f32 %v1754, %v1754
        %v1787 = vmul.f32 %v1755, %v1755
        %v1788 = vmul.f32 %v1756, %v1756
        %v1789 = vadd.f32 %v1757, %v1758
        %v1790 = vadd.f32 %v1789, %v1759
        %v1791 = vadd.f32 %v1790, %v1760
        %v1792 = vadd.f32 %v1791, %v1761
        %v1793 = vadd.f32 %v1792, %v1762
        %v1794 = vadd.f32 %v1793, %v1763
        %v1795 = vadd.f32 %v1794, %v1764
        %v1796 = vadd.f32 %v1795, %v1765
        %v1797 = vadd.f32 %v1796, %v1766
        %v1798 = vadd.f32 %v1797, %v1767
        %v1799 = vadd.f32 %v1798, %v1768
        %v1800 = vadd.f32 %v1799, %v1769
        %v1801 = vadd.f32 %v1800, %v1770
        %v1802 = vadd.f32 %v1801, %v1771
        %v1803 = vadd.f32 %v1802, %v1772
        %v1804 = vadd.f32 %v1803, %v1773
        %v1805 = vadd.f32 %v1804, %v1774
        %v1806 = vadd.f32 %v1805, %v1775
        %v1807 = vadd.f32 %v1806, %v1776
        %v1808 = vadd.f32 %v1807, %v1777
        %v1809 = vadd.f32 %v1808, %v1778
        %v1810 = vadd.f32 %v1809, %v1779
        %v1811 = vadd.f32 %v1810, %v1780
        %v1812 = vadd.f32 %v1811, %v1781
        %v1813 = vadd.f32 %v1812, %v1782
        %v1814 = vadd.f32 %v1813, %v1783
        %v1815 = vadd.f32 %v1814, %v1784
        %v1816 = vadd.f32 %v1815, %v1785
        %v1817 = vadd.f32 %v1816, %v1786
        %v1818 = vadd.f32 %v1817, %v1787
        %v1819 = vadd.f32 %v1818, %v1788
        %v1820 = vrot.slane %v1819, 4
        %v1821 = vadd.f32 %v1819, %v1820
        %v1822 = vrot.slane %v1821, 2
        %v1823 = vadd.f32 %v1821, %v1822
        %v1824 = vrot.slane %v1823, 1
        %v1825 = vadd.f32 %v1823, %v1824
        %v1826 = vmul.f32 %v1825, 0.00390625
        %v1827 = vadd.f32 %v1826, 1e-05
        %v1828 = vrsqrt.pop %v1827
        %v1829 = vmul.f32 %v1685, %v1828
        %v1831 = vlaneseq
        %v1832 = vshrl.u32 %v1831, 7
        %v1833 = vsub.s32 0, %v1832
        %v1834 = vrot.slane %v1829, %v1833
        %v1836 = vmul.f32 %v1725, %v1834
        %v1837 = vmul.f32 %v1726, %v1834
        %v1838 = vmul.f32 %v1727, %v1834
        %v1839 = vmul.f32 %v1728, %v1834
        %v1840 = vmul.f32 %v1729, %v1834
        %v1841 = vmul.f32 %v1730, %v1834
        %v1842 = vmul.f32 %v1731, %v1834
        %v1843 = vmul.f32 %v1732, %v1834
        %v1844 = vmul.f32 %v1733, %v1834
        %v1845 = vmul.f32 %v1734, %v1834
        %v1846 = vmul.f32 %v1735, %v1834
        %v1847 = vmul.f32 %v1736, %v1834
        %v1848 = vmul.f32 %v1737, %v1834
        %v1849 = vmul.f32 %v1738, %v1834
        %v1850 = vmul.f32 %v1739, %v1834
        %v1851 = vmul.f32 %v1740, %v1834
        %v1852 = vmul.f32 %v1741, %v1834
        %v1853 = vmul.f32 %v1742, %v1834
        %v1854 = vmul.f32 %v1743, %v1834
        %v1855 = vmul.f32 %v1744, %v1834
        %v1856 = vmul.f32 %v1745, %v1834
        %v1857 = vmul.f32 %v1746, %v1834
        %v1858 = vmul.f32 %v1747, %v1834
        %v1859 = vmul.f32 %v1748, %v1834
        %v1860 = vmul.f32 %v1749, %v1834
        %v1861 = vmul.f32 %v1750, %v1834
        %v1862 = vmul.f32 %v1751, %v1834
        %v1863 = vmul.f32 %v1752, %v1834
        %v1864 = vmul.f32 %v1753, %v1834
        %v1865 = vmul.f32 %v1754, %v1834
        %v1866 = vmul.f32 %v1755, %v1834
        %v1867 = vmul.f32 %v1756, %v1834
        %v1869 = vlaneseq
        %v1870 = vshrl.u32 %v1869, 7
        %v1871 = vsub.s32 0, %v1870
        %v1872 = vrot.slane %v1686, %v1871
        %v1874 = vadd.f32 %v1836, %v1872
        %v1875 = vadd.f32 %v1837, %v1872
        %v1876 = vadd.f32 %v1838, %v1872
        %v1877 = vadd.f32 %v1839, %v1872
        %v1878 = vadd.f32 %v1840, %v1872
        %v1879 = vadd.f32 %v1841, %v1872
        %v1880 = vadd.f32 %v1842, %v1872
        %v1881 = vadd.f32 %v1843, %v1872
        %v1882 = vadd.f32 %v1844, %v1872
        %v1883 = vadd.f32 %v1845, %v1872
        %v1884 = vadd.f32 %v1846, %v1872
        %v1885 = vadd.f32 %v1847, %v1872
        %v1886 = vadd.f32 %v1848, %v1872
        %v1887 = vadd.f32 %v1849, %v1872
        %v1888 = vadd.f32 %v1850, %v1872
        %v1889 = vadd.f32 %v1851, %v1872
        %v1890 = vadd.f32 %v1852, %v1872
        %v1891 = vadd.f32 %v1853, %v1872
        %v1892 = vadd.f32 %v1854, %v1872
        %v1893 = vadd.f32 %v1855, %v1872
        %v1894 = vadd.f32 %v1856, %v1872
        %v1895 = vadd.f32 %v1857, %v1872
        %v1896 = vadd.f32 %v1858, %v1872
        %v1897 = vadd.f32 %v1859, %v1872
        %v1898 = vadd.f32 %v1860, %v1872
        %v1899 = vadd.f32 %v1861, %v1872
        %v1900 = vadd.f32 %v1862, %v1872
        %v1901 = vadd.f32 %v1863, %v1872
        %v1902 = vadd.f32 %v1864, %v1872
        %v1903 = vadd.f32 %v1865, %v1872
        %v1904 = vadd.f32 %v1866, %v1872
        %v1905 = vadd.f32 %v1867, %v1872
        %v1906 = vmax.f32 %v1874, 0.0
        %v1907 = vmax.f32 %v1875, 0.0
        %v1908 = vmax.f32 %v1876, 0.0
        %v1909 = vmax.f32 %v1877, 0.0
        %v1910 = vmax.f32 %v1878, 0.0
        %v1911 = vmax.f32 %v1879, 0.0
        %v1912 = vmax.f32 %v1880, 0.0
        %v1913 = vmax.f32 %v1881, 0.0
        %v1914 = vmax.f32 %v1882, 0.0
        %v1915 = vmax.f32 %v1883, 0.0
        %v1916 = vmax.f32 %v1884, 0.0
        %v1917 = vmax.f32 %v1885, 0.0
        %v1918 = vmax.f32 %v1886, 0.0
        %v1919 = vmax.f32 %v1887, 0.0
        %v1920 = vmax.f32 %v1888, 0.0
        %v1921 = vmax.f32 %v1889, 0.0
        %v1922 = vmax.f32 %v1890, 0.0
        %v1923 = vmax.f32 %v1891, 0.0
        %v1924 = vmax.f32 %v1892, 0.0
        %v1925 = vmax.f32 %v1893, 0.0
        %v1926 = vmax.f32 %v1894, 0.0
        %v1927 = vmax.f32 %v1895, 0.0
        %v1928 = vmax.f32 %v1896, 0.0
        %v1929 = vmax.f32 %v1897, 0.0
        %v1930 = vmax.f32 %v1898, 0.0
        %v1931 = vmax.f32 %v1899, 0.0
        %v1932 = vmax.f32 %v1900, 0.0
        %v1933 = vmax.f32 %v1901, 0.0
        %v1934 = vmax.f32 %v1902, 0.0
        %v1935 = vmax.f32 %v1903, 0.0
        %v1936 = vmax.f32 %v1904, 0.0
        %v1937 = vmax.f32 %v1905, 0.0
        %v1938 = vpack.c.bf16 %v1907, %v1906
        %v1939 = vpack.c.bf16 %v1909, %v1908
        %v1940 = vpack.c.bf16 %v1911, %v1910
        %v1941 = vpack.c.bf16 %v1913, %v1912
        %v1942 = vpack.c.bf16 %v1915, %v1914
        %v1943 = vpack.c.bf16 %v1917, %v1916
        %v1944 = vpack.c.bf16 %v1919, %v1918
        %v1945 = vpack.c.bf16 %v1921, %v1920
        %v1946 = vpack.c.bf16 %v1923, %v1922
        %v1947 = vpack.c.bf16 %v1925, %v1924
        %v1948 = vpack.c.bf16 %v1927, %v1926
        %v1949 = vpack.c.bf16 %v1929, %v1928
        %v1950 = vpack.c.bf16 %v1931, %v1930
        %v1951 = vpack.c.bf16 %v1933, %v1932
        %v1952 = vpack.c.bf16 %v1935, %v1934
        %v1953 = vpack.c.bf16 %v1937, %v1936
        %1954 = vst [vmem:[#allocation2] sm:$0xff] %v1938
        %1955 = vst [vmem:[#allocation2 + $0x8] sm:$0xff] %v1939
        %1956 = vst [vmem:[#allocation2 + $0x10] sm:$0xff] %v1940
        %1957 = vst [vmem:[#allocation2 + $0x18] sm:$0xff] %v1941
        %1958 = vst [vmem:[#allocation2 + $0x20] sm:$0xff] %v1942
        %1959 = vst [vmem:[#allocation2 + $0x28] sm:$0xff] %v1943
        %1960 = vst [vmem:[#allocation2 + $0x30] sm:$0xff] %v1944
        %1961 = vst [vmem:[#allocation2 + $0x38] sm:$0xff] %v1945
        %1962 = vst [vmem:[#allocation2 + $0x40] sm:$0xff] %v1946
        %1963 = vst [vmem:[#allocation2 + $0x48] sm:$0xff] %v1947
        %1964 = vst [vmem:[#allocation2 + $0x50] sm:$0xff] %v1948
        %1965 = vst [vmem:[#allocation2 + $0x58] sm:$0xff] %v1949
        %1966 = vst [vmem:[#allocation2 + $0x60] sm:$0xff] %v1950
        %1967 = vst [vmem:[#allocation2 + $0x68] sm:$0xff] %v1951
        %1968 = vst [vmem:[#allocation2 + $0x70] sm:$0xff] %v1952
        %1969 = vst [vmem:[#allocation2 + $0x78] sm:$0xff] %v1953
        %p1970 = scmp.eq.s32.totalorder %s22, 1
        // Predicated region
        $region73: #{tpu_custom_call.1} parent=51 // pred_check
          %p1971 = pneg %p1970
        $region74: #{tpu_custom_call.1} parent=51 // pred_check_branch
          %1973 = sbr.rel (%p1971) target = $region76
        $region75: #{tpu_custom_call.1} parent=51 // pred_region
          %1974 = vst [vmem:[#allocation10] sm:$0xff] %v1906
          %1975 = vst [vmem:[#allocation10 + $0x8] sm:$0xff] %v1907
          %1976 = vst [vmem:[#allocation10 + $0x10] sm:$0xff] %v1908
          %1977 = vst [vmem:[#allocation10 + $0x18] sm:$0xff] %v1909
          %1978 = vst [vmem:[#allocation10 + $0x20] sm:$0xff] %v1910
          %1979 = vst [vmem:[#allocation10 + $0x28] sm:$0xff] %v1911
          %1980 = vst [vmem:[#allocation10 + $0x30] sm:$0xff] %v1912
          %1981 = vst [vmem:[#allocation10 + $0x38] sm:$0xff] %v1913
          %1982 = vst [vmem:[#allocation10 + $0x40] sm:$0xff] %v1914
          %1983 = vst [vmem:[#allocation10 + $0x48] sm:$0xff] %v1915
          %1984 = vst [vmem:[#allocation10 + $0x50] sm:$0xff] %v1916
          %1985 = vst [vmem:[#allocation10 + $0x58] sm:$0xff] %v1917
          %1986 = vst [vmem:[#allocation10 + $0x60] sm:$0xff] %v1918
          %1987 = vst [vmem:[#allocation10 + $0x68] sm:$0xff] %v1919
          %1988 = vst [vmem:[#allocation10 + $0x70] sm:$0xff] %v1920
          %1989 = vst [vmem:[#allocation10 + $0x78] sm:$0xff] %v1921
          %1990 = vst [vmem:[#allocation10 + $0x80] sm:$0xff] %v1922
          %1991 = vst [vmem:[#allocation10 + $0x88] sm:$0xff] %v1923
          %1992 = vst [vmem:[#allocation10 + $0x90] sm:$0xff] %v1924
          %1993 = vst [vmem:[#allocation10 + $0x98] sm:$0xff] %v1925
          %1994 = vst [vmem:[#allocation10 + $0xa0] sm:$0xff] %v1926
          %1995 = vst [vmem:[#allocation10 + $0xa8] sm:$0xff] %v1927
          %1996 = vst [vmem:[#allocation10 + $0xb0] sm:$0xff] %v1928
          %1997 = vst [vmem:[#allocation10 + $0xb8] sm:$0xff] %v1929
          %1998 = vst [vmem:[#allocation10 + $0xc0] sm:$0xff] %v1930
          %1999 = vst [vmem:[#allocation10 + $0xc8] sm:$0xff] %v1931
          %2000 = vst [vmem:[#allocation10 + $0xd0] sm:$0xff] %v1932
          %2001 = vst [vmem:[#allocation10 + $0xd8] sm:$0xff] %v1933
          %2002 = vst [vmem:[#allocation10 + $0xe0] sm:$0xff] %v1934
          %2003 = vst [vmem:[#allocation10 + $0xe8] sm:$0xff] %v1935
          %2004 = vst [vmem:[#allocation10 + $0xf0] sm:$0xff] %v1936
          %2005 = vst [vmem:[#allocation10 + $0xf8] sm:$0xff] %v1937
        $region76: #{tpu_custom_call.1} parent=51 // pred_fallthru
          _
        // Predicated region
        $region77: #{tpu_custom_call.1} parent=51 // pred_check
          %p2006 = pneg %p233
        $region78: #{tpu_custom_call.1} parent=51 // pred_check_branch
          %2008 = sbr.rel (%p2006) target = $region80
        $region79: #{tpu_custom_call.1} parent=51 // pred_region
          %s2010 = ssub.s32 4096, 4096
          %2011 = vsyncadd [#allocation5], %s2010
          %s2012 = sshll.u32 [#allocation10], 4
          %s2013 = int_to_ptr.vmem [resolvable:$true] %s2012
          %2018 = dma.vmem_to_hbm [thread:$0]  %s2013, 4096, %s8, [#allocation5], 128, 128, 8
        $region80: #{tpu_custom_call.1} parent=51 // pred_fallthru
          _
        // Predicated region
        $region81: #{tpu_custom_call.1} parent=51 // pred_check
          %p2019 = pneg %p233
        $region82: #{tpu_custom_call.1} parent=51 // pred_check_branch
          %2021 = sbr.rel (%p2019) target = $region84
        $region83: #{tpu_custom_call.1} parent=51 // pred_region
          %2022 = dma.done [#allocation5], 4096
        $region84: #{tpu_custom_call.1} parent=51 // pred_fallthru
          _
      $region52: #{tpu_custom_call.1} parent=5 // pred_fallthru
        _
      %p2023 = scmp.le.s32.totalorder 2, %s17
      // Predicated region
      $region85: #{tpu_custom_call.1} parent=5 // pred_check
        %p2024 = pneg %p2023
      $region86: #{tpu_custom_call.1} parent=5 // pred_check_branch
        %2026 = sbr.rel (%p2024) target = $region88
      $region87: #{tpu_custom_call.1} parent=5 // pred_region
        %s2027 = ssub.s32 %s17, 2
      $region88: #{tpu_custom_call.1} parent=5 // pred_fallthru
        _
    $region6: #{tpu_custom_call.1} parent=1 // loop_footer
      %s21 = sadd.s32 1, %s17
    $region7: #{tpu_custom_call.1} parent=1 // loop_footer_branch
      %16 = sbr.rel target = $region3
    $region8: #{tpu_custom_call.1} parent=1 // loop_exit
      _
    %2028 = vsyncpa [#allocation4], 1
    %s2029 = scalar_lea.sflag [#allocation4], 1
    %2030 = vsyncpa %s2029, 1
    %2031 = vsyncpa [#allocation7], 1
    %2032 = vsyncpa [#allocation5], 1
    %s2033 = scalar_lea.sflag [#allocation5], 1
    %2034 = vsyncpa %s2033, 1

</llo_original>
